<compile_context>
chip_gen: v7x
topology: tpu7x:2x2x1
jax: 0.10.0
libtpu: 0.0.40
codegen_flags: <defaults>
</compile_context>

<pallas_src>
import functools

import jax
import jax.numpy as jnp
from jax.experimental import pallas as pl
from jax.experimental.pallas import tpu as pltpu

_NEG_BIG = -1e30        # fill for padded class logits (acts like -inf without NaNs)
_MAX_POOL_CHUNKS = 16   # pooling loop is statically unrolled; bound its length


def _round_up(x, m):
    return (x + m - 1) // m * m


def da_classifier_kernel(t_chunk, emb_ref, tokw_ref, labels_ref,
                         w_enc_ref, b_enc_ref, w1_ref, b1_ref, w2_ref, b2_ref,
                         loss_part_ref, pred_ref):
    """One TILE_N-row tile: pool -> encode -> MLP -> log_softmax -> loss/preds."""
    tile_n, t_pad, e_dim = emb_ref.shape
    n_chunks = t_pad // t_chunk

    # --- DialogueEmbedder (simplified): masked mean-pool + tanh projection ---
    # TODO(synk): the original DialogueEmbedder runs a (Bi)LSTM conversation
    # encoder; replaced here by masked mean-pooling + a tanh projection.
    # Chunked over T (static unroll == fori_loop(unroll=True)) so only a
    # (tile_n, t_chunk, E) f32 temp is live at any time -- never the full f32
    # tile.  1/len is folded into tok_w in the wrapper, so no divide here.
    pooled = jnp.zeros((tile_n, e_dim), jnp.float32)
    for c in range(n_chunks):                       # static python ints -> static slices
        lo = c * t_chunk
        chunk = emb_ref[:, lo:lo + t_chunk, :].astype(jnp.float32)   # (tile_n, tc, E)
        w = tokw_ref[:, lo:lo + t_chunk]                             # (tile_n, tc) f32
        pooled = pooled + jnp.sum(chunk * w[:, :, None], axis=1)     # (tile_n, E) f32

    encoded = jnp.tanh(
        jnp.dot(pooled.astype(jnp.bfloat16), w_enc_ref[...],
                preferred_element_type=jnp.float32) + b_enc_ref[...])   # (tile_n, Hp)

    # --- classifier: Linear(Hp,128) -> ReLU -> Linear(128, Cp) (lane-padded) ---
    h = jnp.maximum(
        jnp.dot(encoded.astype(jnp.bfloat16), w1_ref[...],
                preferred_element_type=jnp.float32) + b1_ref[...], 0.0)  # (tile_n, 128)
    logits = (jnp.dot(h.astype(jnp.bfloat16), w2_ref[...],
                      preferred_element_type=jnp.float32) + b2_ref[...]) # (tile_n, Cp)

    # --- log_softmax over the (lane-dense, padded) class axis in f32 ---
    # padded class logits are -1e30 (finite), so exp underflows to exactly 0.
    mx = jnp.max(logits, axis=1, keepdims=True)                          # (tile_n, 1)
    lse = mx + jnp.log(jnp.sum(jnp.exp(logits - mx), axis=1, keepdims=True))
    logp = logits - lse                                                  # (tile_n, Cp)

    # --- per-row loss, emitted lane-dense -------------------------------------
    # gather-by-onehot, then contract the class axis against a ones row with an
    # NT matmul so the per-row values land directly in lanes ((1, tile_n)) and
    # the output store is an unmasked, lane-dense slab.
    labels = labels_ref[...]                                             # (tile_n, 1) i32
    ids = jax.lax.broadcasted_iota(jnp.int32, logits.shape, 1)           # (tile_n, Cp)
    onehot = (ids == labels).astype(jnp.float32)
    masked_logp = logp * onehot                                          # 1 nonzero / row
    ones_c = jnp.ones((1, logits.shape[1]), jnp.float32)
    lane_nll = -jax.lax.dot_general(
        ones_c, masked_logp, (((1,), (1,)), ((), ())),
        precision=jax.lax.Precision.HIGHEST,
        preferred_element_type=jnp.float32)                              # (1, tile_n)
    loss_part_ref[0] = lane_nll          # conversation_mask applied in the wrapper

    # --- predictions: first index attaining the max (== torch.sort desc [:, 0]) ---
    pred_ref[...] = jnp.min(jnp.where(logits == mx, ids, logits.shape[1]),
                            axis=1, keepdims=True).astype(jnp.int32)     # (tile_n, 1)


def da_classifier_forward(embeddings, input_mask, conversation_mask,
                          max_num_utterances, labels, params, *, tile_n=None):
    """Returns (label_loss: f32 scalar, labels_predictions: int32 (N_utt,))."""
    n_utt, seq_len, emb_dim = embeddings.shape
    hidden = params["w_enc"].shape[1]
    h1 = params["w1"].shape[1]
    n_cls = params["w2"].shape[1]
    h_pad = _round_up(max(hidden, 128), 128)
    h1_pad = _round_up(max(h1, 128), 128)
    c_pad = _round_up(max(n_cls, 128), 128)

    # pooling chunk length: multiple of 8, at most _MAX_POOL_CHUNKS chunks
    t_chunk = 8 * max(1, -(-seq_len // (8 * _MAX_POOL_CHUNKS)))
    t_pad = -(-seq_len // t_chunk) * t_chunk
    pad_t = t_pad - seq_len

    # --- generation-aware VMEM / tile sizing (v5e/v6e: 128 MiB, v7x: 64 MiB/TC) ---
    try:
        info = pltpu.get_tpu_info()
        vmem_cap = int(getattr(info, "vmem_capacity_bytes", 64 * 1024 * 1024))
    except Exception:                       # conservative (v7x per-core) fallback
        vmem_cap = 64 * 1024 * 1024
    vmem_limit = min(int(vmem_cap * 0.85), 112 * 1024 * 1024)

    n_buf = 3                               # embedding stream pipelined up to 3-deep
    if tile_n is None:
        weight_bytes = 2 * (2 * (emb_dim * h_pad + h_pad * h1_pad + h1_pad * c_pad)
                            + 4 * (h_pad + h1_pad + c_pad))       # double-buffered
        budget = max(vmem_limit - weight_bytes - (4 << 20), 1 << 20)
        per_row = (n_buf * t_pad * emb_dim * 2                    # bf16 emb buffers
                   + 2 * max(t_pad, 128) * 4                      # tok_w f32 buffers
                   + 3 * t_chunk * emb_dim * 4                    # f32 pooling chunk temps
                   + (emb_dim + h_pad + 2 * h1_pad + 4 * c_pad) * 4)  # row intermediates
        tile_n = budget // per_row
        if tile_n >= 512:                   # full-height MXU M tiles on big inputs
            tile_n = tile_n // 256 * 256
    tile_n = int(max(8, min(2048, tile_n // 8 * 8)))
    tile_n = int(min(tile_n, _round_up(n_utt, 8)))
    n_pad = _round_up(n_utt, tile_n)
    num_tiles = n_pad // tile_n
    pad_n = n_pad - n_utt

    f32 = jnp.float32
    # bf16 embeddings halve HBM traffic & VMEM footprint; math stays f32 in-kernel.
    emb = embeddings.astype(jnp.bfloat16)
    tok_mask = input_mask.astype(f32)
    denom = jnp.maximum(jnp.sum(tok_mask, axis=1, keepdims=True), 1.0)
    tok_w = tok_mask / denom                                     # fold 1/len into mask
    labels_col = labels.reshape(-1, 1).astype(jnp.int32)
    if pad_t:
        emb = jnp.pad(emb, ((0, 0), (0, pad_t), (0, 0)))
        tok_w = jnp.pad(tok_w, ((0, 0), (0, pad_t)))             # padded tokens weigh 0
    if pad_n:
        emb = jnp.pad(emb, ((0, pad_n), (0, 0), (0, 0)))
        tok_w = jnp.pad(tok_w, ((0, pad_n), (0, 0)))
        labels_col = jnp.pad(labels_col, ((0, pad_n), (0, 0)))   # padded rows dropped later

    # Weights: bf16 MXU operands, f32 biases; pad H, 100 and classes to 128 lanes.
    # Zero-padding is exact (tanh(0)=0 feeds zero w1 rows).  b2 stays f32 so the
    # -1e30 padded-class fill is finite (bf16 would turn it into -inf -> NaNs).
    w_enc = jnp.pad(params["w_enc"], ((0, 0), (0, h_pad - hidden))).astype(jnp.bfloat16)
    b_enc = jnp.pad(params["b_enc"].reshape(1, hidden),
                    ((0, 0), (0, h_pad - hidden))).astype(f32)
    w1 = jnp.pad(params["w1"], ((0, h_pad - hidden), (0, h1_pad - h1))).astype(jnp.bfloat16)
    b1 = jnp.pad(params["b1"].reshape(1, h1), ((0, 0), (0, h1_pad - h1))).astype(f32)
    w2 = jnp.pad(params["w2"],
                 ((0, h1_pad - h1), (0, c_pad - n_cls))).astype(jnp.bfloat16)
    b2 = jnp.pad(params["b2"].reshape(1, n_cls), ((0, 0), (0, c_pad - n_cls)),
                 constant_values=_NEG_BIG).astype(f32)

    # --- BlockSpecs ---
    emb_shape, emb_idx = (tile_n, t_pad, emb_dim), (lambda i: (i, 0, 0))
    emb_spec = pl.BlockSpec(emb_shape, emb_idx)
    if hasattr(pl, "Buffered") and num_tiles >= 3:
        try:      # deeper pipelining on the big streamed input (hide DMA at tile edges)
            emb_spec = pl.BlockSpec(emb_shape, emb_idx, pipeline_mode=pl.Buffered(3))
        except TypeError:
            emb_spec = pl.BlockSpec(emb_shape, emb_idx)

    row_spec2 = pl.BlockSpec((tile_n, t_pad), lambda i: (i, 0))
    col_spec = pl.BlockSpec((tile_n, 1), lambda i: (i, 0))

    def const_spec(shape):                 # weights stay VMEM-resident across the grid
        return pl.BlockSpec(shape, lambda i: (0, 0))

    loss_spec = pl.BlockSpec((1, 1, tile_n), lambda i: (i, 0, 0))  # lane-dense partials

    flops = 2 * n_pad * (t_pad * emb_dim + emb_dim * h_pad + h_pad * h1_pad
                         + h1_pad * c_pad + c_pad)
    transcendentals = n_pad * (h_pad + c_pad + 1)
    bytes_accessed = (emb.size * 2 + tok_w.size * 4 + labels_col.size * 4
                      + (w_enc.size + w1.size + w2.size) * 2
                      + (b_enc.size + b1.size + b2.size) * 4
                      + n_pad * 8)

    loss_parts, preds = pl.pallas_call(
        functools.partial(da_classifier_kernel, t_chunk),
        grid=(num_tiles,),
        in_specs=[emb_spec, row_spec2, col_spec,
                  const_spec((emb_dim, h_pad)), const_spec((1, h_pad)),
                  const_spec((h_pad, h1_pad)), const_spec((1, h1_pad)),
                  const_spec((h1_pad, c_pad)), const_spec((1, c_pad))],
        out_specs=(loss_spec, col_spec),
        out_shape=(jax.ShapeDtypeStruct((num_tiles, 1, tile_n), jnp.float32),
                   jax.ShapeDtypeStruct((n_pad, 1), jnp.int32)),
        compiler_params=pltpu.CompilerParams(
            dimension_semantics=("parallel",),
            vmem_limit_bytes=int(vmem_limit)),
        cost_estimate=pl.CostEstimate(flops=int(flops),
                                      transcendentals=int(transcendentals),
                                      bytes_accessed=int(bytes_accessed)),
    )(emb, tok_w, labels_col, w_enc, b_enc, w1, b1, w2, b2)

    # conversation-mask weighting + normalization done once in the wrapper
    # (padded rows are simply sliced away).
    conv = conversation_mask.reshape(-1).astype(f32)
    loss_rows = loss_parts.reshape(-1)[:n_utt]
    label_loss = jnp.sum(loss_rows * conv) / jnp.sum(conv)
    return label_loss, preds[:n_utt, 0]


def _reference_forward(embeddings, input_mask, conversation_mask,
                       max_num_utterances, labels, params):
    """Plain-JAX reference of the same math (incl. bf16 operand rounding)."""
    f32 = jnp.float32
    bf = lambda x: x.astype(jnp.bfloat16).astype(f32)
    emb = bf(embeddings)
    tok = input_mask.astype(f32)
    denom = jnp.maximum(jnp.sum(tok, axis=1, keepdims=True), 1.0)
    pooled = jnp.sum(emb * (tok / denom)[:, :, None], axis=1)
    encoded = jnp.tanh(bf(pooled) @ bf(params["w_enc"]) + params["b_enc"])
    h = jnp.maximum(bf(encoded) @ bf(params["w1"]) + params["b1"], 0.0)
    logits = bf(h) @ bf(params["w2"]) + params["b2"]
    logp = jax.nn.log_softmax(logits, axis=1)
    label_logp = jnp.take_along_axis(logp, labels[:, None], axis=1)
    cm = conversation_mask.reshape(-1, 1).astype(f32)
    loss = jnp.sum(-label_logp * cm) / jnp.sum(cm)
    preds = jnp.argmax(logits, axis=1).astype(jnp.int32)
    return loss, preds


if __name__ == "__main__":
    # Small shapes consistent with the module.
    batch = 2
    max_num_utterances = 5
    n_utt = batch * max_num_utterances          # 10 -> exercises row padding (to 16)
    seq_len = 12                                # -> T padded to 16, 2 pooling chunks
    emb_dim = 32
    encoder_hidden = 16
    hidden_size = 2 * encoder_hidden            # args.encoding == 'bilstm'
    output_size = 10

    key = jax.random.PRNGKey(0)
    k_emb, k_lab, k_we, k_w1, k_w2 = jax.random.split(key, 5)

    embeddings = jax.random.normal(k_emb, (n_utt, seq_len, emb_dim), jnp.float32)
    # token mask: last three tokens padded out
    input_mask = jnp.concatenate(
        [jnp.ones((n_utt, seq_len - 3), jnp.float32),
         jnp.zeros((n_utt, 3), jnp.float32)], axis=1)
    # conversation mask: second conversation has its last two utterances padded
    conversation_mask = jnp.array(
        [[1, 1, 1, 1, 1],
         [1, 1, 1, 0, 0]], jnp.float32)
    labels = jax.random.randint(k_lab, (n_utt,), 0, output_size, jnp.int32)

    # Deterministic synthetic parameters (not a checkpoint).
    params = {
        "w_enc": 0.1 * jax.random.normal(k_we, (emb_dim, hidden_size), jnp.float32),
        "b_enc": jnp.zeros((1, hidden_size), jnp.float32),
        "w1": 0.1 * jax.random.normal(k_w1, (hidden_size, 100), jnp.float32),
        "b1": 0.01 * jnp.ones((1, 100), jnp.float32),
        "w2": 0.1 * jax.random.normal(k_w2, (100, output_size), jnp.float32),
        "b2": 0.01 * jnp.ones((1, output_size), jnp.float32),
    }

    # tile_n=8 -> 2 grid tiles + row padding (10 -> 16) to exercise the tiled path.
    loss, preds = da_classifier_forward(
        embeddings, input_mask, conversation_mask, max_num_utterances,
        labels, params, tile_n=8)
    jax.block_until_ready((loss, preds))

    ref_loss, ref_preds = _reference_forward(
        embeddings, input_mask, conversation_mask, max_num_utterances,
        labels, params)

    assert preds.shape == (n_utt,) and preds.dtype == jnp.int32
    assert jnp.allclose(loss, ref_loss, rtol=5e-3, atol=5e-3), (loss, ref_loss)
    assert jnp.array_equal(preds, ref_preds), (preds, ref_preds)

    print("KERNEL_OK")
</pallas_src>

<mosaic_0001>
module attributes {stable_mosaic.version = 11 : i64} {
  func.func @da_classifier_kernel(%arg0: i32, %arg1: memref<8x16x32xbf16, #tpu.memory_space<vmem>>, %arg2: memref<8x16xf32, #tpu.memory_space<vmem>>, %arg3: memref<8x1xi32, #tpu.memory_space<vmem>>, %arg4: memref<32x128xbf16, #tpu.memory_space<vmem>>, %arg5: memref<1x128xf32, #tpu.memory_space<vmem>>, %arg6: memref<128x128xbf16, #tpu.memory_space<vmem>>, %arg7: memref<1x128xf32, #tpu.memory_space<vmem>>, %arg8: memref<128x128xbf16, #tpu.memory_space<vmem>>, %arg9: memref<1x128xf32, #tpu.memory_space<vmem>>, %arg10: memref<1x1x8xf32, #tpu.memory_space<vmem>>, %arg11: memref<8x1xi32, #tpu.memory_space<vmem>>) attributes {dimension_semantics = [#tpu.dimension_semantics<parallel>], iteration_bounds = array<i64: 2>, scalar_prefetch = 0 : i64, scratch_operands = 0 : i64, tpu.core_type = #tpu.core_type<tc>, window_params = [{transform_indices = @transform_0, window_bounds = array<i64: 8, 16, 32>}, {transform_indices = @transform_1, window_bounds = array<i64: 8, 16>}, {transform_indices = @transform_2, window_bounds = array<i64: 8, 1>}, {pipeline_mode = #tpu.pipeline_mode<synchronous>, transform_indices = @transform_3, window_bounds = array<i64: 32, 128>}, {pipeline_mode = #tpu.pipeline_mode<synchronous>, transform_indices = @transform_4, window_bounds = array<i64: 1, 128>}, {pipeline_mode = #tpu.pipeline_mode<synchronous>, transform_indices = @transform_5, window_bounds = array<i64: 128, 128>}, {pipeline_mode = #tpu.pipeline_mode<synchronous>, transform_indices = @transform_6, window_bounds = array<i64: 1, 128>}, {pipeline_mode = #tpu.pipeline_mode<synchronous>, transform_indices = @transform_7, window_bounds = array<i64: 128, 128>}, {pipeline_mode = #tpu.pipeline_mode<synchronous>, transform_indices = @transform_8, window_bounds = array<i64: 1, 128>}, {transform_indices = @transform_9, window_bounds = array<i64: 1, 1, 8>}, {transform_indices = @transform_10, window_bounds = array<i64: 8, 1>}]} {
    %cst = arith.constant 0.000000e+00 : f32
    %0 = vector.broadcast %cst : f32 to vector<8x32xf32>
    %c0 = arith.constant 0 : index
    %c0_0 = arith.constant 0 : index
    %c0_1 = arith.constant 0 : index
    %1 = vector.load %arg1[%c0, %c0_0, %c0_1] : memref<8x16x32xbf16, #tpu.memory_space<vmem>>, vector<8x8x32xbf16>
    %2 = arith.extf %1 : vector<8x8x32xbf16> to vector<8x8x32xf32>
    %c0_2 = arith.constant 0 : index
    %c0_3 = arith.constant 0 : index
    %3 = vector.load %arg2[%c0_2, %c0_3] : memref<8x16xf32, #tpu.memory_space<vmem>>, vector<8x8xf32>
    %4 = vector.shape_cast %3 : vector<8x8xf32> to vector<8x8x1xf32>
    %5 = vector.broadcast %4 : vector<8x8x1xf32> to vector<8x8x32xf32>
    %6 = arith.mulf %2, %5 : vector<8x8x32xf32>
    %cst_4 = arith.constant dense<0.000000e+00> : vector<8x32xf32>
    %7 = vector.multi_reduction <add>, %6, %cst_4 [1] : vector<8x8x32xf32> to vector<8x32xf32>
    %8 = arith.addf %0, %7 : vector<8x32xf32>
    %c0_5 = arith.constant 0 : index
    %c8 = arith.constant 8 : index
    %c0_6 = arith.constant 0 : index
    %9 = vector.load %arg1[%c0_5, %c8, %c0_6] : memref<8x16x32xbf16, #tpu.memory_space<vmem>>, vector<8x8x32xbf16>
    %10 = arith.extf %9 : vector<8x8x32xbf16> to vector<8x8x32xf32>
    %c0_7 = arith.constant 0 : index
    %c8_8 = arith.constant 8 : index
    %11 = vector.load %arg2[%c0_7, %c8_8] : memref<8x16xf32, #tpu.memory_space<vmem>>, vector<8x8xf32>
    %12 = vector.shape_cast %11 : vector<8x8xf32> to vector<8x8x1xf32>
    %13 = vector.broadcast %12 : vector<8x8x1xf32> to vector<8x8x32xf32>
    %14 = arith.mulf %10, %13 : vector<8x8x32xf32>
    %cst_9 = arith.constant dense<0.000000e+00> : vector<8x32xf32>
    %15 = vector.multi_reduction <add>, %14, %cst_9 [1] : vector<8x8x32xf32> to vector<8x32xf32>
    %16 = arith.addf %8, %15 : vector<8x32xf32>
    %17 = arith.truncf %16 : vector<8x32xf32> to vector<8x32xbf16>
    %c0_10 = arith.constant 0 : index
    %c0_11 = arith.constant 0 : index
    %18 = vector.load %arg4[%c0_10, %c0_11] : memref<32x128xbf16, #tpu.memory_space<vmem>>, vector<32x128xbf16>
    %cst_12 = arith.constant dense<0.000000e+00> : vector<8x128xf32>
    %19 = tpu.matmul %17, %18, %cst_12 {dimension_numbers = #tpu.dot_dimension_numbers<[1], [0], [0], [1], [0, 0, 1, 1], [], []>} : vector<8x32xbf16>, vector<32x128xbf16>, vector<8x128xf32> -> vector<8x128xf32>
    %c0_13 = arith.constant 0 : index
    %c0_14 = arith.constant 0 : index
    %20 = vector.load %arg5[%c0_13, %c0_14] : memref<1x128xf32, #tpu.memory_space<vmem>>, vector<1x128xf32>
    %21 = vector.broadcast %20 : vector<1x128xf32> to vector<8x128xf32>
    %22 = arith.addf %19, %21 : vector<8x128xf32>
    %23 = math.tanh %22 : vector<8x128xf32>
    %24 = arith.truncf %23 : vector<8x128xf32> to vector<8x128xbf16>
    %c0_15 = arith.constant 0 : index
    %c0_16 = arith.constant 0 : index
    %25 = vector.load %arg6[%c0_15, %c0_16] : memref<128x128xbf16, #tpu.memory_space<vmem>>, vector<128x128xbf16>
    %cst_17 = arith.constant dense<0.000000e+00> : vector<8x128xf32>
    %26 = tpu.matmul %24, %25, %cst_17 {dimension_numbers = #tpu.dot_dimension_numbers<[1], [0], [0], [1], [0, 0, 1, 1], [], []>} : vector<8x128xbf16>, vector<128x128xbf16>, vector<8x128xf32> -> vector<8x128xf32>
    %c0_18 = arith.constant 0 : index
    %c0_19 = arith.constant 0 : index
    %27 = vector.load %arg7[%c0_18, %c0_19] : memref<1x128xf32, #tpu.memory_space<vmem>>, vector<1x128xf32>
    %28 = vector.broadcast %27 : vector<1x128xf32> to vector<8x128xf32>
    %29 = arith.addf %26, %28 : vector<8x128xf32>
    %cst_20 = arith.constant 0.000000e+00 : f32
    %30 = vector.broadcast %cst_20 : f32 to vector<8x128xf32>
    %31 = arith.maximumf %29, %30 : vector<8x128xf32>
    %32 = arith.truncf %31 : vector<8x128xf32> to vector<8x128xbf16>
    %c0_21 = arith.constant 0 : index
    %c0_22 = arith.constant 0 : index
    %33 = vector.load %arg8[%c0_21, %c0_22] : memref<128x128xbf16, #tpu.memory_space<vmem>>, vector<128x128xbf16>
    %cst_23 = arith.constant dense<0.000000e+00> : vector<8x128xf32>
    %34 = tpu.matmul %32, %33, %cst_23 {dimension_numbers = #tpu.dot_dimension_numbers<[1], [0], [0], [1], [0, 0, 1, 1], [], []>} : vector<8x128xbf16>, vector<128x128xbf16>, vector<8x128xf32> -> vector<8x128xf32>
    %c0_24 = arith.constant 0 : index
    %c0_25 = arith.constant 0 : index
    %35 = vector.load %arg9[%c0_24, %c0_25] : memref<1x128xf32, #tpu.memory_space<vmem>>, vector<1x128xf32>
    %36 = vector.broadcast %35 : vector<1x128xf32> to vector<8x128xf32>
    %37 = arith.addf %34, %36 : vector<8x128xf32>
    %cst_26 = arith.constant dense<0xFF800000> : vector<8xf32>
    %38 = vector.multi_reduction <maximumf>, %37, %cst_26 [1] : vector<8x128xf32> to vector<8xf32>
    %39 = vector.shape_cast %38 : vector<8xf32> to vector<8x1xf32>
    %40 = vector.broadcast %39 : vector<8x1xf32> to vector<8x128xf32>
    %41 = arith.subf %37, %40 : vector<8x128xf32>
    %42 = math.exp %41 : vector<8x128xf32>
    %cst_27 = arith.constant dense<0.000000e+00> : vector<8xf32>
    %43 = vector.multi_reduction <add>, %42, %cst_27 [1] : vector<8x128xf32> to vector<8xf32>
    %44 = vector.shape_cast %43 : vector<8xf32> to vector<8x1xf32>
    %45 = math.log %44 : vector<8x1xf32>
    %46 = arith.addf %39, %45 : vector<8x1xf32>
    %47 = vector.broadcast %46 : vector<8x1xf32> to vector<8x128xf32>
    %48 = arith.subf %37, %47 : vector<8x128xf32>
    %c0_28 = arith.constant 0 : index
    %c0_29 = arith.constant 0 : index
    %49 = vector.load %arg3[%c0_28, %c0_29] : memref<8x1xi32, #tpu.memory_space<vmem>>, vector<8x1xi32>
    %50 = tpu.iota {dimensions = array<i32: 1>} : vector<8x128xi32>
    %51 = vector.broadcast %49 : vector<8x1xi32> to vector<8x128xi32>
    %52 = arith.cmpi eq, %50, %51 : vector<8x128xi32>
    %53 = arith.extui %52 : vector<8x128xi1> to vector<8x128xi32>
    %54 = arith.sitofp %53 : vector<8x128xi32> to vector<8x128xf32>
    %55 = arith.mulf %48, %54 : vector<8x128xf32>
    %cst_30 = arith.constant 1.000000e+00 : f32
    %56 = vector.broadcast %cst_30 : f32 to vector<1x128xf32>
    %cst_31 = arith.constant dense<0.000000e+00> : vector<1x8xf32>
    %57 = tpu.matmul %56, %55, %cst_31 {dimension_numbers = #tpu.dot_dimension_numbers<[1], [1], [0], [0], [0, 0, 1, 0], [], []>, precision = #tpu.contract_precision<fp32>} : vector<1x128xf32>, vector<8x128xf32>, vector<1x8xf32> -> vector<1x8xf32>
    %cst_32 = arith.constant 0.000000e+00 : f32
    %58 = vector.broadcast %cst_32 : f32 to vector<1x8xf32>
    %59 = arith.subf %58, %57 : vector<1x8xf32>
    %c0_33 = arith.constant 0 : index
    %c0_34 = arith.constant 0 : index
    %c0_35 = arith.constant 0 : index
    %60 = vector.load %arg10[%c0_33, %c0_34, %c0_35] : memref<1x1x8xf32, #tpu.memory_space<vmem>>, vector<1x1x8xf32>
    %61 = vector.shape_cast %60 : vector<1x1x8xf32> to vector<1x8xf32>
    %62 = vector.shape_cast %59 : vector<1x8xf32> to vector<1x1x8xf32>
    tpu.vector_store %arg10[%c0_33, %c0_34, %c0_35], %62 {strides = array<i32>} : memref<1x1x8xf32, #tpu.memory_space<vmem>>, vector<1x1x8xf32>,
    %63 = vector.broadcast %39 : vector<8x1xf32> to vector<8x128xf32>
    %64 = arith.cmpf oeq, %37, %63 : vector<8x128xf32>
    %c128_i32 = arith.constant 128 : i32
    %65 = vector.broadcast %c128_i32 : i32 to vector<8x128xi32>
    %66 = arith.select %64, %50, %65 : vector<8x128xi1>, vector<8x128xi32>
    %cst_36 = arith.constant dense<2147483647> : vector<8xi32>
    %67 = vector.multi_reduction <minsi>, %66, %cst_36 [1] : vector<8x128xi32> to vector<8xi32>
    %68 = vector.shape_cast %67 : vector<8xi32> to vector<8x1xi32>
    %c0_37 = arith.constant 0 : index
    %c0_38 = arith.constant 0 : index
    %69 = vector.load %arg11[%c0_37, %c0_38] : memref<8x1xi32, #tpu.memory_space<vmem>>, vector<8x1xi32>
    tpu.vector_store %arg11[%c0_37, %c0_38], %68 {strides = array<i32>} : memref<8x1xi32, #tpu.memory_space<vmem>>, vector<8x1xi32>,
    return
  }
  func.func @transform_0(%arg0: i32) -> (i32, i32, i32) {
    %c0_i32 = arith.constant 0 : i32
    %c0_i32_0 = arith.constant 0 : i32
    %c0_i32_1 = arith.constant 0 : i32
    return %arg0, %c0_i32, %c0_i32_0 : i32, i32, i32
  }
  func.func @transform_1(%arg0: i32) -> (i32, i32) {
    %c0_i32 = arith.constant 0 : i32
    %c0_i32_0 = arith.constant 0 : i32
    return %arg0, %c0_i32 : i32, i32
  }
  func.func @transform_2(%arg0: i32) -> (i32, i32) {
    %c0_i32 = arith.constant 0 : i32
    %c0_i32_0 = arith.constant 0 : i32
    return %arg0, %c0_i32 : i32, i32
  }
  func.func @transform_3(%arg0: i32) -> (i32, i32) {
    %c0_i32 = arith.constant 0 : i32
    %c0_i32_0 = arith.constant 0 : i32
    %c0_i32_1 = arith.constant 0 : i32
    return %c0_i32, %c0_i32_0 : i32, i32
  }
  func.func @transform_4(%arg0: i32) -> (i32, i32) {
    %c0_i32 = arith.constant 0 : i32
    %c0_i32_0 = arith.constant 0 : i32
    %c0_i32_1 = arith.constant 0 : i32
    return %c0_i32, %c0_i32_0 : i32, i32
  }
  func.func @transform_5(%arg0: i32) -> (i32, i32) {
    %c0_i32 = arith.constant 0 : i32
    %c0_i32_0 = arith.constant 0 : i32
    %c0_i32_1 = arith.constant 0 : i32
    return %c0_i32, %c0_i32_0 : i32, i32
  }
  func.func @transform_6(%arg0: i32) -> (i32, i32) {
    %c0_i32 = arith.constant 0 : i32
    %c0_i32_0 = arith.constant 0 : i32
    %c0_i32_1 = arith.constant 0 : i32
    return %c0_i32, %c0_i32_0 : i32, i32
  }
  func.func @transform_7(%arg0: i32) -> (i32, i32) {
    %c0_i32 = arith.constant 0 : i32
    %c0_i32_0 = arith.constant 0 : i32
    %c0_i32_1 = arith.constant 0 : i32
    return %c0_i32, %c0_i32_0 : i32, i32
  }
  func.func @transform_8(%arg0: i32) -> (i32, i32) {
    %c0_i32 = arith.constant 0 : i32
    %c0_i32_0 = arith.constant 0 : i32
    %c0_i32_1 = arith.constant 0 : i32
    return %c0_i32, %c0_i32_0 : i32, i32
  }
  func.func @transform_9(%arg0: i32) -> (i32, i32, i32) {
    %c0_i32 = arith.constant 0 : i32
    %c0_i32_0 = arith.constant 0 : i32
    %c0_i32_1 = arith.constant 0 : i32
    return %arg0, %c0_i32, %c0_i32_0 : i32, i32, i32
  }
  func.func @transform_10(%arg0: i32) -> (i32, i32) {
    %c0_i32 = arith.constant 0 : i32
    %c0_i32_0 = arith.constant 0 : i32
    return %arg0, %c0_i32 : i32, i32
  }
}

</mosaic_0001>

<llo_original>
// kernel: tpu_custom_call.1
$region0: #{tpu_custom_call.1}
  #allocation0 [shape = 'u32[]', space=smem, size = 0x4, offset = 0x4, fixed_abs, tag = 'smem constant byte address 0x4 - core index']
  #allocation1 [shape = 'u32[144,128]{1,0:T(1,128)}', space=vmem, size = 0x12000, scoped, tag = 'internal scratch']
  %s0 = inlined_call_operand.hbm [shape: bf16[16,16,32], index: 0, kind: input, shape index: {}]
  %s1 = inlined_call_operand.vmem [shape: f32[16,16], index: 1, kind: input, shape index: {}]
  %s2 = inlined_call_operand.vmem [shape: s32[16,1], index: 2, kind: input, shape index: {}]
  %s3 = inlined_call_operand.hbm [shape: bf16[32,128], index: 3, kind: input, shape index: {}]
  %s4 = inlined_call_operand.vmem [shape: f32[1,128], index: 4, kind: input, shape index: {}]
  %s5 = inlined_call_operand.hbm [shape: bf16[128,128], index: 5, kind: input, shape index: {}]
  %s6 = inlined_call_operand.vmem [shape: f32[1,128], index: 6, kind: input, shape index: {}]
  %s7 = inlined_call_operand.hbm [shape: bf16[128,128], index: 7, kind: input, shape index: {}]
  %s8 = inlined_call_operand.vmem [shape: f32[1,128], index: 8, kind: input, shape index: {}]
  %s9 = inlined_call_operand.hbm [shape: f32[2,1,8], index: 9, kind: output, shape index: {0}]
  %s10 = inlined_call_operand.vmem [shape: s32[16,1], index: 10, kind: output, shape index: {1}]
  %11 = xla_tuple %s9, %s10
  %s12 = sld [smem:[#allocation0]]
  $region93: #{tpu_custom_call.1} parent=0
    _
  %s14 = ssub.s32 1, %s12
  %s15 = scalar_select 0, %s14, %s12
  $region1: #{tpu_custom_call.1} parent=0
    #allocation2 [shape = 'u8[65536]{0}', space=vmem, size = 0x10000, scoped, tag = 'input window, operand 0']
    #allocation3 [shape = 's32[2]{0}', space=sflag, size = 0x8, scoped, tag = 'scoped memory for tpu_custom_call.1']
    #allocation4 [shape = 's32[2]{0}', space=sflag, size = 0x8, scoped, tag = 'scoped memory for tpu_custom_call.1']
    #allocation5 [shape = 'u8[8192]{0}', space=vmem, size = 0x2000, scoped, tag = 'input window, operand 3, single buffered']
    #allocation6 [shape = 's32[1]{0}', space=sflag, size = 0x4, scoped, tag = 'scoped memory for tpu_custom_call.1']
    #allocation7 [shape = 'u8[32768]{0}', space=vmem, size = 0x8000, scoped, tag = 'input window, operand 5, single buffered']
    #allocation8 [shape = 'u8[32768]{0}', space=vmem, size = 0x8000, scoped, tag = 'input window, operand 7, single buffered']
    #allocation9 [shape = 's32[1]{0}', space=sflag, size = 0x4, scoped, tag = 'scoped memory for tpu_custom_call.1']
    #allocation10 [shape = 'u8[1024]{0}', space=vmem, size = 0x400, scoped, tag = 'output window, operand 0']
    %16 = vsyncpa [#allocation3], 0
    %s17 = scalar_lea.sflag [#allocation3], 1
    %18 = vsyncpa %s17, 0
    %19 = vsyncpa [#allocation6], 0
    %20 = vsyncpa [#allocation9], 0
    %21 = vsyncpa [#allocation4], 0
    %s22 = scalar_lea.sflag [#allocation4], 1
    %23 = vsyncpa %s22, 0
    loop: start=0, step=1, limit=4
    $region2: #{tpu_custom_call.1} parent=1 // loop_pre_header
      _
    $region3: #{tpu_custom_call.1} parent=1 // loop_header
      %s25 = sphi 0, %s29
      %p26 = scmp.ge.s32.totalorder %s25, 4
      %s35 = sphi 0, %s37
      %s38 = sphi 0, %s35
      %s39 = sphi 0, %s38
      %s55 = sphi 0, %s39
      %s61 = sphi 0, %s63
      %s64 = sphi 0, %s61
      %s65 = sphi 0, %s64
      %s81 = sphi 0, %s65
      %s87 = sphi 0, %s89
      %s90 = sphi 0, %s87
      %s91 = sphi 0, %s90
      %s107 = sphi 0, %s91
      %s111 = sphi 0, %s111
      %s113 = sphi 0, %s111
      %s114 = sphi 0, %s113
      %s128 = sphi 0, %s114
      %s132 = sphi 0, %s132
      %s134 = sphi 0, %s132
      %s135 = sphi 0, %s134
      %s149 = sphi 0, %s135
      %s153 = sphi 0, %s153
      %s155 = sphi 0, %s153
      %s156 = sphi 0, %s155
      %s170 = sphi 0, %s156
      %s174 = sphi 0, %s174
      %s176 = sphi 0, %s174
      %s177 = sphi 0, %s176
      %s191 = sphi 0, %s177
      %s195 = sphi 0, %s195
      %s197 = sphi 0, %s195
      %s198 = sphi 0, %s197
      %s212 = sphi 0, %s198
      %s216 = sphi 0, %s216
      %s218 = sphi 0, %s216
      %s219 = sphi 0, %s218
      %s233 = sphi 0, %s219
      %s239 = sphi 0, %s241
      %s242 = sphi 0, %s239
      %s243 = sphi 0, %s242
      %s259 = sphi 0, %s243
      %s265 = sphi 0, %s267
      %s268 = sphi 0, %s265
      %s269 = sphi 0, %s268
      %s285 = sphi 0, %s269
    $region4: #{tpu_custom_call.1} parent=1 // loop_header_branch
      %28 = sbr.rel (%p26) target = $region8
    $region5: #{tpu_custom_call.1} parent=1 // loop_body
      %s30 = ssub.s32 %s25, 1
      %s31 = ssub.s32 %s25, 2
      %s32 = sadd.s32 %s25, 1
      %s33 = ssub.s32 %s25, %s32
      %p34 = scmp.eq.s32.totalorder %s33, 0
      %s36 = sadd.s32 %s35, 1
      %s37 = scalar_select %p34, %s35, %s36
      %p40 = pneg %p34
      %p41 = scmp.eq.s32.totalorder %s25, 1
      %p42 = por %p40, %p41
      %p43 = scmp.ne.s32.totalorder %s35, %s38
      %p44 = scmp.eq.s32.totalorder %s25, 0
      %p45 = por %p43, %p44
      %p46 = scmp.ne.s32.totalorder %s35, %s38
      %p47 = scmp.eq.s32.totalorder %s30, 1
      %p48 = por %p46, %p47
      %p49 = scmp.ne.s32.totalorder %s38, %s39
      %p50 = scmp.eq.s32.totalorder %s30, 0
      %p51 = por %p49, %p50
      %p52 = scmp.ne.s32.totalorder %s38, %s39
      %p53 = scmp.eq.s32.totalorder %s31, 1
      %p54 = por %p52, %p53
      %p56 = scmp.ne.s32.totalorder %s39, %s55
      %p57 = scmp.eq.s32.totalorder %s31, 0
      %p58 = por %p56, %p57
      %s59 = ssub.s32 %s25, %s32
      %p60 = scmp.eq.s32.totalorder %s59, 0
      %s62 = sadd.s32 %s61, 1
      %s63 = scalar_select %p60, %s61, %s62
      %p66 = pneg %p60
      %p67 = scmp.eq.s32.totalorder %s25, 1
      %p68 = por %p66, %p67
      %p69 = scmp.ne.s32.totalorder %s61, %s64
      %p70 = scmp.eq.s32.totalorder %s25, 0
      %p71 = por %p69, %p70
      %p72 = scmp.ne.s32.totalorder %s61, %s64
      %p73 = scmp.eq.s32.totalorder %s30, 1
      %p74 = por %p72, %p73
      %p75 = scmp.ne.s32.totalorder %s64, %s65
      %p76 = scmp.eq.s32.totalorder %s30, 0
      %p77 = por %p75, %p76
      %p78 = scmp.ne.s32.totalorder %s64, %s65
      %p79 = scmp.eq.s32.totalorder %s31, 1
      %p80 = por %p78, %p79
      %p82 = scmp.ne.s32.totalorder %s65, %s81
      %p83 = scmp.eq.s32.totalorder %s31, 0
      %p84 = por %p82, %p83
      %s85 = ssub.s32 %s25, %s32
      %p86 = scmp.eq.s32.totalorder %s85, 0
      %s88 = sadd.s32 %s87, 1
      %s89 = scalar_select %p86, %s87, %s88
      %p92 = pneg %p86
      %p93 = scmp.eq.s32.totalorder %s25, 1
      %p94 = por %p92, %p93
      %p95 = scmp.ne.s32.totalorder %s87, %s90
      %p96 = scmp.eq.s32.totalorder %s25, 0
      %p97 = por %p95, %p96
      %p98 = scmp.ne.s32.totalorder %s87, %s90
      %p99 = scmp.eq.s32.totalorder %s30, 1
      %p100 = por %p98, %p99
      %p101 = scmp.ne.s32.totalorder %s90, %s91
      %p102 = scmp.eq.s32.totalorder %s30, 0
      %p103 = por %p101, %p102
      %p104 = scmp.ne.s32.totalorder %s90, %s91
      %p105 = scmp.eq.s32.totalorder %s31, 1
      %p106 = por %p104, %p105
      %p108 = scmp.ne.s32.totalorder %s91, %s107
      %p109 = scmp.eq.s32.totalorder %s31, 0
      %p110 = por %p108, %p109
      %s112 = sadd.s32 %s111, 1
      %p115 = scmp.eq.s32.totalorder %s25, 1
      %p116 = scmp.ne.s32.totalorder %s111, %s113
      %p117 = scmp.eq.s32.totalorder %s25, 0
      %p118 = por %p116, %p117
      %p119 = scmp.ne.s32.totalorder %s111, %s113
      %p120 = scmp.eq.s32.totalorder %s30, 1
      %p121 = por %p119, %p120
      %p122 = scmp.ne.s32.totalorder %s113, %s114
      %p123 = scmp.eq.s32.totalorder %s30, 0
      %p124 = por %p122, %p123
      %p125 = scmp.ne.s32.totalorder %s113, %s114
      %p126 = scmp.eq.s32.totalorder %s31, 1
      %p127 = por %p125, %p126
      %p129 = scmp.ne.s32.totalorder %s114, %s128
      %p130 = scmp.eq.s32.totalorder %s31, 0
      %p131 = por %p129, %p130
      %s133 = sadd.s32 %s132, 1
      %p136 = scmp.eq.s32.totalorder %s25, 1
      %p137 = scmp.ne.s32.totalorder %s132, %s134
      %p138 = scmp.eq.s32.totalorder %s25, 0
      %p139 = por %p137, %p138
      %p140 = scmp.ne.s32.totalorder %s132, %s134
      %p141 = scmp.eq.s32.totalorder %s30, 1
      %p142 = por %p140, %p141
      %p143 = scmp.ne.s32.totalorder %s134, %s135
      %p144 = scmp.eq.s32.totalorder %s30, 0
      %p145 = por %p143, %p144
      %p146 = scmp.ne.s32.totalorder %s134, %s135
      %p147 = scmp.eq.s32.totalorder %s31, 1
      %p148 = por %p146, %p147
      %p150 = scmp.ne.s32.totalorder %s135, %s149
      %p151 = scmp.eq.s32.totalorder %s31, 0
      %p152 = por %p150, %p151
      %s154 = sadd.s32 %s153, 1
      %p157 = scmp.eq.s32.totalorder %s25, 1
      %p158 = scmp.ne.s32.totalorder %s153, %s155
      %p159 = scmp.eq.s32.totalorder %s25, 0
      %p160 = por %p158, %p159
      %p161 = scmp.ne.s32.totalorder %s153, %s155
      %p162 = scmp.eq.s32.totalorder %s30, 1
      %p163 = por %p161, %p162
      %p164 = scmp.ne.s32.totalorder %s155, %s156
      %p165 = scmp.eq.s32.totalorder %s30, 0
      %p166 = por %p164, %p165
      %p167 = scmp.ne.s32.totalorder %s155, %s156
      %p168 = scmp.eq.s32.totalorder %s31, 1
      %p169 = por %p167, %p168
      %p171 = scmp.ne.s32.totalorder %s156, %s170
      %p172 = scmp.eq.s32.totalorder %s31, 0
      %p173 = por %p171, %p172
      %s175 = sadd.s32 %s174, 1
      %p178 = scmp.eq.s32.totalorder %s25, 1
      %p179 = scmp.ne.s32.totalorder %s174, %s176
      %p180 = scmp.eq.s32.totalorder %s25, 0
      %p181 = por %p179, %p180
      %p182 = scmp.ne.s32.totalorder %s174, %s176
      %p183 = scmp.eq.s32.totalorder %s30, 1
      %p184 = por %p182, %p183
      %p185 = scmp.ne.s32.totalorder %s176, %s177
      %p186 = scmp.eq.s32.totalorder %s30, 0
      %p187 = por %p185, %p186
      %p188 = scmp.ne.s32.totalorder %s176, %s177
      %p189 = scmp.eq.s32.totalorder %s31, 1
      %p190 = por %p188, %p189
      %p192 = scmp.ne.s32.totalorder %s177, %s191
      %p193 = scmp.eq.s32.totalorder %s31, 0
      %p194 = por %p192, %p193
      %s196 = sadd.s32 %s195, 1
      %p199 = scmp.eq.s32.totalorder %s25, 1
      %p200 = scmp.ne.s32.totalorder %s195, %s197
      %p201 = scmp.eq.s32.totalorder %s25, 0
      %p202 = por %p200, %p201
      %p203 = scmp.ne.s32.totalorder %s195, %s197
      %p204 = scmp.eq.s32.totalorder %s30, 1
      %p205 = por %p203, %p204
      %p206 = scmp.ne.s32.totalorder %s197, %s198
      %p207 = scmp.eq.s32.totalorder %s30, 0
      %p208 = por %p206, %p207
      %p209 = scmp.ne.s32.totalorder %s197, %s198
      %p210 = scmp.eq.s32.totalorder %s31, 1
      %p211 = por %p209, %p210
      %p213 = scmp.ne.s32.totalorder %s198, %s212
      %p214 = scmp.eq.s32.totalorder %s31, 0
      %p215 = por %p213, %p214
      %s217 = sadd.s32 %s216, 1
      %p220 = scmp.eq.s32.totalorder %s25, 1
      %p221 = scmp.ne.s32.totalorder %s216, %s218
      %p222 = scmp.eq.s32.totalorder %s25, 0
      %p223 = por %p221, %p222
      %p224 = scmp.ne.s32.totalorder %s216, %s218
      %p225 = scmp.eq.s32.totalorder %s30, 1
      %p226 = por %p224, %p225
      %p227 = scmp.ne.s32.totalorder %s218, %s219
      %p228 = scmp.eq.s32.totalorder %s30, 0
      %p229 = por %p227, %p228
      %p230 = scmp.ne.s32.totalorder %s218, %s219
      %p231 = scmp.eq.s32.totalorder %s31, 1
      %p232 = por %p230, %p231
      %p234 = scmp.ne.s32.totalorder %s219, %s233
      %p235 = scmp.eq.s32.totalorder %s31, 0
      %p236 = por %p234, %p235
      %s237 = ssub.s32 %s25, %s32
      %p238 = scmp.eq.s32.totalorder %s237, 0
      %s240 = sadd.s32 %s239, 1
      %s241 = scalar_select %p238, %s239, %s240
      %p244 = pneg %p238
      %p245 = scmp.eq.s32.totalorder %s25, 1
      %p246 = por %p244, %p245
      %p247 = scmp.ne.s32.totalorder %s239, %s242
      %p248 = scmp.eq.s32.totalorder %s25, 0
      %p249 = por %p247, %p248
      %p250 = scmp.ne.s32.totalorder %s239, %s242
      %p251 = scmp.eq.s32.totalorder %s30, 1
      %p252 = por %p250, %p251
      %p253 = scmp.ne.s32.totalorder %s242, %s243
      %p254 = scmp.eq.s32.totalorder %s30, 0
      %p255 = por %p253, %p254
      %p256 = scmp.ne.s32.totalorder %s242, %s243
      %p257 = scmp.eq.s32.totalorder %s31, 1
      %p258 = por %p256, %p257
      %p260 = scmp.ne.s32.totalorder %s243, %s259
      %p261 = scmp.eq.s32.totalorder %s31, 0
      %p262 = por %p260, %p261
      %s263 = ssub.s32 %s25, %s32
      %p264 = scmp.eq.s32.totalorder %s263, 0
      %s266 = sadd.s32 %s265, 1
      %s267 = scalar_select %p264, %s265, %s266
      %p270 = pneg %p264
      %p271 = scmp.eq.s32.totalorder %s25, 1
      %p272 = por %p270, %p271
      %p273 = scmp.ne.s32.totalorder %s265, %s268
      %p274 = scmp.eq.s32.totalorder %s25, 0
      %p275 = por %p273, %p274
      %p276 = scmp.ne.s32.totalorder %s265, %s268
      %p277 = scmp.eq.s32.totalorder %s30, 1
      %p278 = por %p276, %p277
      %p279 = scmp.ne.s32.totalorder %s268, %s269
      %p280 = scmp.eq.s32.totalorder %s30, 0
      %p281 = por %p279, %p280
      %p282 = scmp.ne.s32.totalorder %s268, %s269
      %p283 = scmp.eq.s32.totalorder %s31, 1
      %p284 = por %p282, %p283
      %p286 = scmp.ne.s32.totalorder %s269, %s285
      %p287 = scmp.eq.s32.totalorder %s31, 0
      %p288 = por %p286, %p287
      %p289 = scmp.le.s32.totalorder 1, %s25
      %p290 = scmp.lt.s32.totalorder %s25, 3
      %p291 = pnand %p289, %p290
      %p292 = pneg %p291
      // Predicated region
      $region9: #{tpu_custom_call.1} parent=5 // pred_check
        _
      $region10: #{tpu_custom_call.1} parent=5 // pred_check_branch
        %294 = sbr.rel (%p291) target = $region12
      $region11: #{tpu_custom_call.1} parent=5 // pred_region
        %s295 = ssub.s32 %s25, 1
        // Predicated region
        $region13: #{tpu_custom_call.1} parent=11 // pred_check
          %p296 = pneg %p124
        $region14: #{tpu_custom_call.1} parent=11 // pred_check_branch
          %298 = sbr.rel (%p296) target = $region16
        $region15: #{tpu_custom_call.1} parent=11 // pred_region
          %s300 = ssub.s32 256, 256
          %301 = vsyncadd [#allocation6], %s300
          %s302 = sshll.u32 [#allocation5], 4
          %s303 = int_to_ptr.vmem [resolvable:$true] %s302
          %308 = dma.hbm_to_vmem [thread:$0]  %s3, 256, %s303, [#allocation6], 64, 64, 4
        $region16: #{tpu_custom_call.1} parent=11 // pred_fallthru
          _
        // Predicated region
        $region17: #{tpu_custom_call.1} parent=11 // pred_check
          %p309 = pneg %p145
        $region18: #{tpu_custom_call.1} parent=11 // pred_check_branch
          %311 = sbr.rel (%p309) target = $region20
        $region19: #{tpu_custom_call.1} parent=11 // pred_region
          _
        $region20: #{tpu_custom_call.1} parent=11 // pred_fallthru
          _
        // Predicated region
        $region21: #{tpu_custom_call.1} parent=11 // pred_check
          %p312 = pneg %p166
        $region22: #{tpu_custom_call.1} parent=11 // pred_check_branch
          %314 = sbr.rel (%p312) target = $region24
        $region23: #{tpu_custom_call.1} parent=11 // pred_region
          %s316 = ssub.s32 1024, 1024
          %317 = vsyncadd [#allocation6], %s316
          %s318 = sshll.u32 [#allocation7], 4
          %s319 = int_to_ptr.vmem [resolvable:$true] %s318
          %324 = dma.hbm_to_vmem [thread:$0]  %s5, 1024, %s319, [#allocation6], 64, 64, 4
        $region24: #{tpu_custom_call.1} parent=11 // pred_fallthru
          _
        // Predicated region
        $region25: #{tpu_custom_call.1} parent=11 // pred_check
          %p325 = pneg %p187
        $region26: #{tpu_custom_call.1} parent=11 // pred_check_branch
          %327 = sbr.rel (%p325) target = $region28
        $region27: #{tpu_custom_call.1} parent=11 // pred_region
          _
        $region28: #{tpu_custom_call.1} parent=11 // pred_fallthru
          _
        // Predicated region
        $region29: #{tpu_custom_call.1} parent=11 // pred_check
          %p328 = pneg %p208
        $region30: #{tpu_custom_call.1} parent=11 // pred_check_branch
          %330 = sbr.rel (%p328) target = $region32
        $region31: #{tpu_custom_call.1} parent=11 // pred_region
          %s332 = ssub.s32 1024, 1024
          %333 = vsyncadd [#allocation9], %s332
          %s334 = sshll.u32 [#allocation8], 4
          %s335 = int_to_ptr.vmem [resolvable:$true] %s334
          %340 = dma.hbm_to_vmem [thread:$0]  %s7, 1024, %s335, [#allocation9], 64, 64, 4
        $region32: #{tpu_custom_call.1} parent=11 // pred_fallthru
          _
        // Predicated region
        $region33: #{tpu_custom_call.1} parent=11 // pred_check
          %p341 = pneg %p229
        $region34: #{tpu_custom_call.1} parent=11 // pred_check_branch
          %343 = sbr.rel (%p341) target = $region36
        $region35: #{tpu_custom_call.1} parent=11 // pred_region
          _
        $region36: #{tpu_custom_call.1} parent=11 // pred_fallthru
          _
      $region12: #{tpu_custom_call.1} parent=5 // pred_fallthru
        _
      %p344 = scmp.lt.s32.totalorder %s25, 2
      // Predicated region
      $region37: #{tpu_custom_call.1} parent=5 // pred_check
        %p345 = pneg %p344
      $region38: #{tpu_custom_call.1} parent=5 // pred_check_branch
        %347 = sbr.rel (%p345) target = $region40
      $region39: #{tpu_custom_call.1} parent=5 // pred_region
        // Predicated region
        $region41: #{tpu_custom_call.1} parent=39 // pred_check
          %p348 = pneg %p45
        $region42: #{tpu_custom_call.1} parent=39 // pred_check_branch
          %350 = sbr.rel (%p348) target = $region44
        $region43: #{tpu_custom_call.1} parent=39 // pred_region
          %s351 = sand.u32 %s35, 1
          %s352 = scalar_lea.sflag [#allocation3], %s351
          %s353 = sand.u32 %s35, 1
          %s354 = smul.addr %s353, 64
          %s355 = scalar_lea.vmem [#allocation2], %s354
          %s356 = smul.u32 8, %s25
          %s358 = ssub.s32 1024, 1024
          %359 = vsyncadd %s352, %s358
          %s360 = smul.addr %s356, 2
          %s361 = smul.addr %s360, 64
          %s362 = scalar_lea.hbm %s0, %s361
          %s363 = sshll.u32 %s355, 4
          %s364 = int_to_ptr.vmem [resolvable:$true] %s363
          %369 = dma.hbm_to_vmem [thread:$0]  %s362, 1024, %s364, %s352, 64, 64, 4
        $region44: #{tpu_custom_call.1} parent=39 // pred_fallthru
          _
        // Predicated region
        $region45: #{tpu_custom_call.1} parent=39 // pred_check
          %p370 = pneg %p71
        $region46: #{tpu_custom_call.1} parent=39 // pred_check_branch
          %372 = sbr.rel (%p370) target = $region48
        $region47: #{tpu_custom_call.1} parent=39 // pred_region
          %p373 = scmp.lt.s32.totalorder %s25, 1
          %s374 = scalar_select %p373, %s25, 1
          %s375 = smul.addr %s374, 8
          %s376 = scalar_lea.vmem %s1, %s375
        $region48: #{tpu_custom_call.1} parent=39 // pred_fallthru
          _
        // Predicated region
        $region49: #{tpu_custom_call.1} parent=39 // pred_check
          %p377 = pneg %p97
        $region50: #{tpu_custom_call.1} parent=39 // pred_check_branch
          %379 = sbr.rel (%p377) target = $region52
        $region51: #{tpu_custom_call.1} parent=39 // pred_region
          %p380 = scmp.lt.s32.totalorder %s25, 1
          %s381 = scalar_select %p380, %s25, 1
          %s382 = smul.addr %s381, 8
          %s383 = scalar_lea.vmem %s2, %s382
        $region52: #{tpu_custom_call.1} parent=39 // pred_fallthru
          _
      $region40: #{tpu_custom_call.1} parent=5 // pred_fallthru
        _
      %p384 = scmp.le.s32.totalorder 1, %s25
      %p385 = scmp.lt.s32.totalorder %s25, 3
      %p386 = pnand %p384, %p385
      %p387 = pneg %p386
      // Predicated region
      $region53: #{tpu_custom_call.1} parent=5 // pred_check
        _
      $region54: #{tpu_custom_call.1} parent=5 // pred_check_branch
        %389 = sbr.rel (%p386) target = $region56
      $region55: #{tpu_custom_call.1} parent=5 // pred_region
        %s390 = ssub.s32 %s25, 1
        %s391 = sand.u32 %s38, 1
        %s392 = scalar_lea.sflag [#allocation3], %s391
        %s393 = sand.u32 %s38, 1
        %s394 = smul.addr %s393, 64
        %s395 = scalar_lea.vmem [#allocation2], %s394
        // Predicated region
        $region57: #{tpu_custom_call.1} parent=55 // pred_check
          %p396 = pneg %p51
        $region58: #{tpu_custom_call.1} parent=55 // pred_check_branch
          %398 = sbr.rel (%p396) target = $region60
        $region59: #{tpu_custom_call.1} parent=55 // pred_region
          %399 = dma.done %s392, 1024
        $region60: #{tpu_custom_call.1} parent=55 // pred_fallthru
          _
        // Predicated region
        $region61: #{tpu_custom_call.1} parent=55 // pred_check
          %p400 = pneg %p124
        $region62: #{tpu_custom_call.1} parent=55 // pred_check_branch
          %402 = sbr.rel (%p400) target = $region64
        $region63: #{tpu_custom_call.1} parent=55 // pred_region
          %403 = dma.done [#allocation6], 256
        $region64: #{tpu_custom_call.1} parent=55 // pred_fallthru
          _
        // Predicated region
        $region65: #{tpu_custom_call.1} parent=55 // pred_check
          %p404 = pneg %p166
        $region66: #{tpu_custom_call.1} parent=55 // pred_check_branch
          %406 = sbr.rel (%p404) target = $region68
        $region67: #{tpu_custom_call.1} parent=55 // pred_region
          %407 = dma.done [#allocation6], 1024
        $region68: #{tpu_custom_call.1} parent=55 // pred_fallthru
          _
        // Predicated region
        $region69: #{tpu_custom_call.1} parent=55 // pred_check
          %p408 = pneg %p208
        $region70: #{tpu_custom_call.1} parent=55 // pred_check_branch
          %410 = sbr.rel (%p408) target = $region72
        $region71: #{tpu_custom_call.1} parent=55 // pred_region
          %411 = dma.done [#allocation9], 1024
        $region72: #{tpu_custom_call.1} parent=55 // pred_fallthru
          _
        %s412 = sand.u32 %s38, 1
        %s413 = scalar_lea.sflag [#allocation3], %s412
        %s414 = sand.u32 %s38, 1
        %s415 = smul.addr %s414, 64
        %s416 = scalar_lea.vmem [#allocation2], %s415
        %p417 = pneg %p51
        %p418 = pneg %p48
        %p419 = scmp.lt.s32.totalorder %s30, 1
        %s420 = scalar_select %p419, %s30, 1
        %s421 = smul.addr %s420, 8
        %s422 = scalar_lea.vmem %s1, %s421
        %p423 = pneg %p77
        %p424 = pneg %p74
        %p425 = scmp.lt.s32.totalorder %s30, 1
        %s426 = scalar_select %p425, %s30, 1
        %s427 = smul.addr %s426, 8
        %s428 = scalar_lea.vmem %s2, %s427
        %p429 = pneg %p103
        %p430 = pneg %p100
        %p431 = pneg %p124
        %p432 = pneg %p121
        %p433 = pneg %p145
        %p434 = pneg %p142
        %p435 = pneg %p166
        %p436 = pneg %p163
        %p437 = pneg %p187
        %p438 = pneg %p184
        %p439 = pneg %p208
        %p440 = pneg %p205
        %p441 = pneg %p229
        %p442 = pneg %p226
        %p443 = pneg %p255
        %p444 = pneg %p252
        %s445 = sand.u32 %s242, 1
        %s446 = scalar_lea.sflag [#allocation4], %s445
        %s447 = sand.u32 %s242, 1
        %s448 = scalar_lea.vmem [#allocation10], %s447
        %p449 = pneg %p281
        %p450 = pneg %p278
        %p451 = scmp.lt.s32.totalorder %s30, 1
        %s452 = scalar_select %p451, %s30, 1
        %s453 = smul.addr %s452, 8
        %s454 = scalar_lea.vmem %s10, %s453
        %s455 = smul.u32 8, %s30
        %p456 = scmp.lt.s32.totalorder %s30, 1
        %s457 = scalar_select %p456, %s30, 1
        %s458 = smul.addr %s457, 8
        %s459 = scalar_lea.vmem %s1, %s458
        %p460 = scmp.lt.s32.totalorder %s30, 1
        %s461 = scalar_select %p460, %s30, 1
        %s462 = smul.addr %s461, 8
        %s463 = scalar_lea.vmem %s2, %s462
        %p464 = scmp.lt.s32.totalorder %s30, 1
        %s465 = scalar_select %p464, %s30, 1
        %s466 = smul.addr %s465, 8
        %s467 = scalar_lea.vmem %s10, %s466
        %v469 = vld [vmem:[%s395] sm:$0xf]
        %v470 = vld [vmem:[%s395 + $0x8] sm:$0xf]
        %v471 = vld [vmem:[%s395 + $0x10] sm:$0xf]
        %v472 = vld [vmem:[%s395 + $0x18] sm:$0xf]
        %v473 = vld [vmem:[%s395 + $0x20] sm:$0xf]
        %v474 = vld [vmem:[%s395 + $0x28] sm:$0xf]
        %v475 = vld [vmem:[%s395 + $0x30] sm:$0xf]
        %v476 = vld [vmem:[%s395 + $0x38] sm:$0xf]
        %v477 = vunpack.c.l.bf16 %v469
        %v478 = vunpack.c.l.bf16 %v470
        %v479 = vunpack.c.l.bf16 %v471
        %v480 = vunpack.c.l.bf16 %v472
        %v481 = vunpack.c.l.bf16 %v473
        %v482 = vunpack.c.l.bf16 %v474
        %v483 = vunpack.c.l.bf16 %v475
        %v484 = vunpack.c.l.bf16 %v476
        %v485 = vld [vmem:[%s459] sm:$0xff]
        %v486 = vlaneseq
        %v487 = vshrl.u32 %v486, 7
        %v488 = vsub.s32 0, %v487
        %v489 = vrot.slane %v485, %v488
        %491 = vbcast.lane.b32.xlu0 %v489, 256
        %v492 = vpop.permute.xlu0 %491
        %v493 = vlaneseq
        %v494 = vshrl.u32 %v493, 7
        %v495 = vsub.s32 1, %v494
        %v496 = vrot.slane %v485, %v495
        %498 = vbcast.lane.b32.xlu0 %v496, 256
        %v499 = vpop.permute.xlu0 %498
        %v500 = vlaneseq
        %v501 = vshrl.u32 %v500, 7
        %v502 = vsub.s32 2, %v501
        %v503 = vrot.slane %v485, %v502
        %505 = vbcast.lane.b32.xlu0 %v503, 256
        %v506 = vpop.permute.xlu0 %505
        %v507 = vlaneseq
        %v508 = vshrl.u32 %v507, 7
        %v509 = vsub.s32 3, %v508
        %v510 = vrot.slane %v485, %v509
        %512 = vbcast.lane.b32.xlu0 %v510, 256
        %v513 = vpop.permute.xlu0 %512
        %v514 = vlaneseq
        %v515 = vshrl.u32 %v514, 7
        %v516 = vsub.s32 4, %v515
        %v517 = vrot.slane %v485, %v516
        %519 = vbcast.lane.b32.xlu0 %v517, 256
        %v520 = vpop.permute.xlu0 %519
        %v521 = vlaneseq
        %v522 = vshrl.u32 %v521, 7
        %v523 = vsub.s32 5, %v522
        %v524 = vrot.slane %v485, %v523
        %526 = vbcast.lane.b32.xlu0 %v524, 256
        %v527 = vpop.permute.xlu0 %526
        %v528 = vlaneseq
        %v529 = vshrl.u32 %v528, 7
        %v530 = vsub.s32 6, %v529
        %v531 = vrot.slane %v485, %v530
        %533 = vbcast.lane.b32.xlu0 %v531, 256
        %v534 = vpop.permute.xlu0 %533
        %v535 = vlaneseq
        %v536 = vshrl.u32 %v535, 7
        %v537 = vsub.s32 7, %v536
        %v538 = vrot.slane %v485, %v537
        %540 = vbcast.lane.b32.xlu0 %v538, 256
        %v541 = vpop.permute.xlu0 %540
        %v542 = vmul.f32 %v477, %v492
        %v543 = vmul.f32 %v478, %v499
        %v544 = vmul.f32 %v479, %v506
        %v545 = vmul.f32 %v480, %v513
        %v546 = vmul.f32 %v481, %v520
        %v547 = vmul.f32 %v482, %v527
        %v548 = vmul.f32 %v483, %v534
        %v549 = vmul.f32 %v484, %v541
        %vm550 = vcmask 261120
        %v551 = vsel %vm550, %v542, 0.0
        %v552 = vrot.slane %v551, 4
        %v553 = vadd.f32 %v551, %v552
        %v554 = vrot.slane %v553, 2
        %v555 = vadd.f32 %v553, %v554
        %v556 = vrot.slane %v555, 1
        %v557 = vadd.f32 %v555, %v556
        %v558 = vsel %vm550, %v543, 0.0
        %v559 = vrot.slane %v558, 4
        %v560 = vadd.f32 %v558, %v559
        %v561 = vrot.slane %v560, 2
        %v562 = vadd.f32 %v560, %v561
        %v563 = vrot.slane %v562, 1
        %v564 = vadd.f32 %v562, %v563
        %v565 = vsel %vm550, %v544, 0.0
        %v566 = vrot.slane %v565, 4
        %v567 = vadd.f32 %v565, %v566
        %v568 = vrot.slane %v567, 2
        %v569 = vadd.f32 %v567, %v568
        %v570 = vrot.slane %v569, 1
        %v571 = vadd.f32 %v569, %v570
        %v572 = vsel %vm550, %v545, 0.0
        %v573 = vrot.slane %v572, 4
        %v574 = vadd.f32 %v572, %v573
        %v575 = vrot.slane %v574, 2
        %v576 = vadd.f32 %v574, %v575
        %v577 = vrot.slane %v576, 1
        %v578 = vadd.f32 %v576, %v577
        %v579 = vsel %vm550, %v546, 0.0
        %v580 = vrot.slane %v579, 4
        %v581 = vadd.f32 %v579, %v580
        %v582 = vrot.slane %v581, 2
        %v583 = vadd.f32 %v581, %v582
        %v584 = vrot.slane %v583, 1
        %v585 = vadd.f32 %v583, %v584
        %v586 = vsel %vm550, %v547, 0.0
        %v587 = vrot.slane %v586, 4
        %v588 = vadd.f32 %v586, %v587
        %v589 = vrot.slane %v588, 2
        %v590 = vadd.f32 %v588, %v589
        %v591 = vrot.slane %v590, 1
        %v592 = vadd.f32 %v590, %v591
        %v593 = vsel %vm550, %v548, 0.0
        %v594 = vrot.slane %v593, 4
        %v595 = vadd.f32 %v593, %v594
        %v596 = vrot.slane %v595, 2
        %v597 = vadd.f32 %v595, %v596
        %v598 = vrot.slane %v597, 1
        %v599 = vadd.f32 %v597, %v598
        %v600 = vsel %vm550, %v549, 0.0
        %v601 = vrot.slane %v600, 4
        %v602 = vadd.f32 %v600, %v601
        %v603 = vrot.slane %v602, 2
        %v604 = vadd.f32 %v602, %v603
        %v605 = vrot.slane %v604, 1
        %v606 = vadd.f32 %v604, %v605
        %v607 = vadd.f32 %v557, 0.0
        %v608 = vadd.f32 %v564, 0.0
        %v609 = vadd.f32 %v571, 0.0
        %v610 = vadd.f32 %v578, 0.0
        %v611 = vadd.f32 %v585, 0.0
        %v612 = vadd.f32 %v592, 0.0
        %v613 = vadd.f32 %v599, 0.0
        %v614 = vadd.f32 %v606, 0.0
        %v615 = vld [vmem:[%s395 + $0x4] sm:$0xf]
        %v616 = vld [vmem:[%s395 + $0xc] sm:$0xf]
        %v617 = vld [vmem:[%s395 + $0x14] sm:$0xf]
        %v618 = vld [vmem:[%s395 + $0x1c] sm:$0xf]
        %v619 = vld [vmem:[%s395 + $0x24] sm:$0xf]
        %v620 = vld [vmem:[%s395 + $0x2c] sm:$0xf]
        %v621 = vld [vmem:[%s395 + $0x34] sm:$0xf]
        %v622 = vld [vmem:[%s395 + $0x3c] sm:$0xf]
        %v623 = vunpack.c.l.bf16 %v615
        %v624 = vunpack.c.l.bf16 %v616
        %v625 = vunpack.c.l.bf16 %v617
        %v626 = vunpack.c.l.bf16 %v618
        %v627 = vunpack.c.l.bf16 %v619
        %v628 = vunpack.c.l.bf16 %v620
        %v629 = vunpack.c.l.bf16 %v621
        %v630 = vunpack.c.l.bf16 %v622
        %s632 = sor.u32 256, 8
        %633 = vbcast.lane.b32.xlu0 %v489, %s632
        %v634 = vpop.permute.xlu0 %633
        %s636 = sor.u32 256, 8
        %637 = vbcast.lane.b32.xlu0 %v496, %s636
        %v638 = vpop.permute.xlu0 %637
        %s640 = sor.u32 256, 8
        %641 = vbcast.lane.b32.xlu0 %v503, %s640
        %v642 = vpop.permute.xlu0 %641
        %s644 = sor.u32 256, 8
        %645 = vbcast.lane.b32.xlu0 %v510, %s644
        %v646 = vpop.permute.xlu0 %645
        %s648 = sor.u32 256, 8
        %649 = vbcast.lane.b32.xlu0 %v517, %s648
        %v650 = vpop.permute.xlu0 %649
        %s652 = sor.u32 256, 8
        %653 = vbcast.lane.b32.xlu0 %v524, %s652
        %v654 = vpop.permute.xlu0 %653
        %s656 = sor.u32 256, 8
        %657 = vbcast.lane.b32.xlu0 %v531, %s656
        %v658 = vpop.permute.xlu0 %657
        %s660 = sor.u32 256, 8
        %661 = vbcast.lane.b32.xlu0 %v538, %s660
        %v662 = vpop.permute.xlu0 %661
        %v663 = vmul.f32 %v623, %v634
        %v664 = vmul.f32 %v624, %v638
        %v665 = vmul.f32 %v625, %v642
        %v666 = vmul.f32 %v626, %v646
        %v667 = vmul.f32 %v627, %v650
        %v668 = vmul.f32 %v628, %v654
        %v669 = vmul.f32 %v629, %v658
        %v670 = vmul.f32 %v630, %v662
        %v671 = vsel %vm550, %v663, 0.0
        %v672 = vrot.slane %v671, 4
        %v673 = vadd.f32 %v671, %v672
        %v674 = vrot.slane %v673, 2
        %v675 = vadd.f32 %v673, %v674
        %v676 = vrot.slane %v675, 1
        %v677 = vadd.f32 %v675, %v676
        %v678 = vsel %vm550, %v664, 0.0
        %v679 = vrot.slane %v678, 4
        %v680 = vadd.f32 %v678, %v679
        %v681 = vrot.slane %v680, 2
        %v682 = vadd.f32 %v680, %v681
        %v683 = vrot.slane %v682, 1
        %v684 = vadd.f32 %v682, %v683
        %v685 = vsel %vm550, %v665, 0.0
        %v686 = vrot.slane %v685, 4
        %v687 = vadd.f32 %v685, %v686
        %v688 = vrot.slane %v687, 2
        %v689 = vadd.f32 %v687, %v688
        %v690 = vrot.slane %v689, 1
        %v691 = vadd.f32 %v689, %v690
        %v692 = vsel %vm550, %v666, 0.0
        %v693 = vrot.slane %v692, 4
        %v694 = vadd.f32 %v692, %v693
        %v695 = vrot.slane %v694, 2
        %v696 = vadd.f32 %v694, %v695
        %v697 = vrot.slane %v696, 1
        %v698 = vadd.f32 %v696, %v697
        %v699 = vsel %vm550, %v667, 0.0
        %v700 = vrot.slane %v699, 4
        %v701 = vadd.f32 %v699, %v700
        %v702 = vrot.slane %v701, 2
        %v703 = vadd.f32 %v701, %v702
        %v704 = vrot.slane %v703, 1
        %v705 = vadd.f32 %v703, %v704
        %v706 = vsel %vm550, %v668, 0.0
        %v707 = vrot.slane %v706, 4
        %v708 = vadd.f32 %v706, %v707
        %v709 = vrot.slane %v708, 2
        %v710 = vadd.f32 %v708, %v709
        %v711 = vrot.slane %v710, 1
        %v712 = vadd.f32 %v710, %v711
        %v713 = vsel %vm550, %v669, 0.0
        %v714 = vrot.slane %v713, 4
        %v715 = vadd.f32 %v713, %v714
        %v716 = vrot.slane %v715, 2
        %v717 = vadd.f32 %v715, %v716
        %v718 = vrot.slane %v717, 1
        %v719 = vadd.f32 %v717, %v718
        %v720 = vsel %vm550, %v670, 0.0
        %v721 = vrot.slane %v720, 4
        %v722 = vadd.f32 %v720, %v721
        %v723 = vrot.slane %v722, 2
        %v724 = vadd.f32 %v722, %v723
        %v725 = vrot.slane %v724, 1
        %v726 = vadd.f32 %v724, %v725
        %v727 = vadd.f32 %v607, %v677
        %v728 = vadd.f32 %v608, %v684
        %v729 = vadd.f32 %v609, %v691
        %v730 = vadd.f32 %v610, %v698
        %v731 = vadd.f32 %v611, %v705
        %v732 = vadd.f32 %v612, %v712
        %v733 = vadd.f32 %v613, %v719
        %v734 = vadd.f32 %v614, %v726
        %v735 = vpack.c.bf16 %v727, %v727
        %v736 = vpack.c.bf16 %v728, %v728
        %v737 = vpack.c.bf16 %v729, %v729
        %v738 = vpack.c.bf16 %v730, %v730
        %v739 = vpack.c.bf16 %v731, %v731
        %v740 = vpack.c.bf16 %v732, %v732
        %v741 = vpack.c.bf16 %v733, %v733
        %v742 = vpack.c.bf16 %v734, %v734
        %v743 = vld [vmem:[#allocation5] sm:$0xf]
        %v744 = vld [vmem:[#allocation5 + $0x4] sm:$0xf]
        %v745 = vld [vmem:[#allocation5 + $0x8] sm:$0xf]
        %v746 = vld [vmem:[#allocation5 + $0xc] sm:$0xf]
        %v747 = vld [vmem:[%s4] sm:$0x1]
        %v749 = vlaneseq
        %v750 = vshrl.u32 %v749, 7
        %v751 = vsub.s32 0, %v750
        %v752 = vrot.slane %v747, %v751
        %v762 = vunpack.c.l.b16 %v735
        %v763 = vunpack.c.l.b16 %v736
        %v764 = vunpack.c.l.b16 %v737
        %v765 = vunpack.c.l.b16 %v738
        %v766 = vunpack.c.l.b16 %v739
        %v767 = vunpack.c.l.b16 %v740
        %v768 = vunpack.c.l.b16 %v741
        %v769 = vunpack.c.l.b16 %v742
        %vm770 = vcmask 1041409
        %v771 = vsel %vm770, %v763, %v762
        %vm772 = vcmask 1042434
        %v773 = vsel %vm772, %v764, %v771
        %vm774 = vcmask 1043459
        %v775 = vsel %vm774, %v765, %v773
        %vm776 = vcmask 1044484
        %v777 = vsel %vm776, %v766, %v775
        %vm778 = vcmask 1045509
        %v779 = vsel %vm778, %v767, %v777
        %vm780 = vcmask 1046534
        %v781 = vsel %vm780, %v768, %v779
        %vm782 = vcmask 1047559
        %v783 = vsel %vm782, %v769, %v781
        %v784 = vpack.c.b16 %v783, %v783
        %v789 = vunpack.c.l.b16 %v743
        %v790 = vunpack.c.l.b16 %v744
        %v791 = vunpack.c.l.b16 %v745
        %v792 = vunpack.c.l.b16 %v746
        %v793 = vpack.c.b16 %v790, %v789
        %v794 = vpack.c.b16 %v792, %v791
        %v798 = vsel %vm550, %v784, 0
        %800 = vmatprep.subr.bf16.mxu0 0
        %801 = vmatpush1.bf16.msra.mxu0 %v793
        %802 = vmatprep.subr.bf16.mxu0 0
        %803 = vmatpush1.bf16.msra.mxu0 %v794
        %804 = vmatprep.subr.bf16.mxu0 0
        %805 = vmatpush1.bf16.msra.mxu0 0
        %806 = vmatprep.subr.bf16.mxu0 0
        %807 = vmatpush1.bf16.msra.mxu0 0
        %808 = vmatprep.subr.bf16.mxu0 0
        %809 = vmatpush1.bf16.msra.mxu0 0
        %810 = vmatprep.subr.bf16.mxu0 0
        %811 = vmatpush1.bf16.msra.mxu0 0
        %812 = vmatprep.subr.bf16.mxu0 0
        %813 = vmatpush1.bf16.msra.mxu0 0
        %814 = vmatprep.subr.bf16.mxu0 0
        %815 = vmatpush1.bf16.msra.mxu0 0
        %816 = vmatprep.subr.bf16.mxu0 0
        %817 = vmatpush1.bf16.msra.mxu0 0
        %818 = vmatprep.subr.bf16.mxu0 0
        %819 = vmatpush1.bf16.msra.mxu0 0
        %820 = vmatprep.subr.bf16.mxu0 0
        %821 = vmatpush1.bf16.msra.mxu0 0
        %822 = vmatprep.subr.bf16.mxu0 0
        %823 = vmatpush1.bf16.msra.mxu0 0
        %824 = vmatprep.subr.bf16.mxu0 0
        %825 = vmatpush1.bf16.msra.mxu0 0
        %826 = vmatprep.subr.bf16.mxu0 0
        %827 = vmatpush1.bf16.msra.mxu0 0
        %828 = vmatprep.subr.bf16.mxu0 0
        %829 = vmatpush1.bf16.msra.mxu0 0
        %830 = vmatprep.subr.bf16.mxu0 0
        %831 = vmatpush1.bf16.msra.mxu0 0
        %832 = vmatprep.mubr.bf16.mxu0 0
        %833 = vmatmul.mubr.bf16.gmra.mrb[0].mxu0 %v798
        %v834 = vpop.f32.mrb[0].mxu0
        %v835 = vadd.f32 %v752, %v834
        %v836 = vpop.f32.mrb[0].mxu0
        %v837 = vpop.f32.mrb[0].mxu0
        %v838 = vpop.f32.mrb[0].mxu0
        %839 = vdwg.mxu0
        %v840 = vtanh.pop %v835
        %v841 = vpack.c.bf16 %v840, %v840
        %v842 = vld [vmem:[#allocation7] sm:$0xf]
        %v843 = vld [vmem:[#allocation7 + $0x4] sm:$0xf]
        %v844 = vld [vmem:[#allocation7 + $0x8] sm:$0xf]
        %v845 = vld [vmem:[#allocation7 + $0xc] sm:$0xf]
        %v846 = vld [vmem:[#allocation7 + $0x10] sm:$0xf]
        %v847 = vld [vmem:[#allocation7 + $0x14] sm:$0xf]
        %v848 = vld [vmem:[#allocation7 + $0x18] sm:$0xf]
        %v849 = vld [vmem:[#allocation7 + $0x1c] sm:$0xf]
        %v850 = vld [vmem:[#allocation7 + $0x20] sm:$0xf]
        %v851 = vld [vmem:[#allocation7 + $0x24] sm:$0xf]
        %v852 = vld [vmem:[#allocation7 + $0x28] sm:$0xf]
        %v853 = vld [vmem:[#allocation7 + $0x2c] sm:$0xf]
        %v854 = vld [vmem:[#allocation7 + $0x30] sm:$0xf]
        %v855 = vld [vmem:[#allocation7 + $0x34] sm:$0xf]
        %v856 = vld [vmem:[#allocation7 + $0x38] sm:$0xf]
        %v857 = vld [vmem:[#allocation7 + $0x3c] sm:$0xf]
        %v858 = vld [vmem:[%s6] sm:$0x1]
        %v860 = vlaneseq
        %v861 = vshrl.u32 %v860, 7
        %v862 = vsub.s32 0, %v861
        %v863 = vrot.slane %v858, %v862
        %v881 = vunpack.c.l.b16 %v842
        %v882 = vunpack.c.l.b16 %v843
        %v883 = vunpack.c.l.b16 %v844
        %v884 = vunpack.c.l.b16 %v845
        %v885 = vunpack.c.l.b16 %v846
        %v886 = vunpack.c.l.b16 %v847
        %v887 = vunpack.c.l.b16 %v848
        %v888 = vunpack.c.l.b16 %v849
        %v889 = vunpack.c.l.b16 %v850
        %v890 = vunpack.c.l.b16 %v851
        %v891 = vunpack.c.l.b16 %v852
        %v892 = vunpack.c.l.b16 %v853
        %v893 = vunpack.c.l.b16 %v854
        %v894 = vunpack.c.l.b16 %v855
        %v895 = vunpack.c.l.b16 %v856
        %v896 = vunpack.c.l.b16 %v857
        %v897 = vpack.c.b16 %v882, %v881
        %v898 = vpack.c.b16 %v884, %v883
        %v899 = vpack.c.b16 %v886, %v885
        %v900 = vpack.c.b16 %v888, %v887
        %v901 = vpack.c.b16 %v890, %v889
        %v902 = vpack.c.b16 %v892, %v891
        %v903 = vpack.c.b16 %v894, %v893
        %v904 = vpack.c.b16 %v896, %v895
        %913 = vmatprep.subr.bf16.mxu0 0
        %914 = vmatpush1.bf16.msra.mxu0 %v897
        %915 = vmatprep.subr.bf16.mxu0 0
        %916 = vmatpush1.bf16.msra.mxu0 %v898
        %917 = vmatprep.subr.bf16.mxu0 0
        %918 = vmatpush1.bf16.msra.mxu0 %v899
        %919 = vmatprep.subr.bf16.mxu0 0
        %920 = vmatpush1.bf16.msra.mxu0 %v900
        %921 = vmatprep.subr.bf16.mxu0 0
        %922 = vmatpush1.bf16.msra.mxu0 %v901
        %923 = vmatprep.subr.bf16.mxu0 0
        %924 = vmatpush1.bf16.msra.mxu0 %v902
        %925 = vmatprep.subr.bf16.mxu0 0
        %926 = vmatpush1.bf16.msra.mxu0 %v903
        %927 = vmatprep.subr.bf16.mxu0 0
        %928 = vmatpush1.bf16.msra.mxu0 %v904
        %929 = vmatprep.subr.bf16.mxu0 0
        %930 = vmatpush1.bf16.msra.mxu0 0
        %931 = vmatprep.subr.bf16.mxu0 0
        %932 = vmatpush1.bf16.msra.mxu0 0
        %933 = vmatprep.subr.bf16.mxu0 0
        %934 = vmatpush1.bf16.msra.mxu0 0
        %935 = vmatprep.subr.bf16.mxu0 0
        %936 = vmatpush1.bf16.msra.mxu0 0
        %937 = vmatprep.subr.bf16.mxu0 0
        %938 = vmatpush1.bf16.msra.mxu0 0
        %939 = vmatprep.subr.bf16.mxu0 0
        %940 = vmatpush1.bf16.msra.mxu0 0
        %941 = vmatprep.subr.bf16.mxu0 0
        %942 = vmatpush1.bf16.msra.mxu0 0
        %943 = vmatprep.subr.bf16.mxu0 0
        %944 = vmatpush1.bf16.msra.mxu0 0
        %945 = vmatprep.mubr.bf16.mxu0 0
        %946 = vmatmul.mubr.bf16.gmra.mrb[0].mxu0 %v841
        %v947 = vpop.f32.mrb[0].mxu0
        %v948 = vadd.f32 %v863, %v947
        %v949 = vpop.f32.mrb[0].mxu0
        %v950 = vpop.f32.mrb[0].mxu0
        %v951 = vpop.f32.mrb[0].mxu0
        %952 = vdwg.mxu0
        %v953 = vmax.f32 %v948, 0.0
        %v954 = vpack.c.bf16 %v953, %v953
        %v955 = vld [vmem:[#allocation8] sm:$0xf]
        %v956 = vld [vmem:[#allocation8 + $0x4] sm:$0xf]
        %v957 = vld [vmem:[#allocation8 + $0x8] sm:$0xf]
        %v958 = vld [vmem:[#allocation8 + $0xc] sm:$0xf]
        %v959 = vld [vmem:[#allocation8 + $0x10] sm:$0xf]
        %v960 = vld [vmem:[#allocation8 + $0x14] sm:$0xf]
        %v961 = vld [vmem:[#allocation8 + $0x18] sm:$0xf]
        %v962 = vld [vmem:[#allocation8 + $0x1c] sm:$0xf]
        %v963 = vld [vmem:[#allocation8 + $0x20] sm:$0xf]
        %v964 = vld [vmem:[#allocation8 + $0x24] sm:$0xf]
        %v965 = vld [vmem:[#allocation8 + $0x28] sm:$0xf]
        %v966 = vld [vmem:[#allocation8 + $0x2c] sm:$0xf]
        %v967 = vld [vmem:[#allocation8 + $0x30] sm:$0xf]
        %v968 = vld [vmem:[#allocation8 + $0x34] sm:$0xf]
        %v969 = vld [vmem:[#allocation8 + $0x38] sm:$0xf]
        %v970 = vld [vmem:[#allocation8 + $0x3c] sm:$0xf]
        %v971 = vld [vmem:[%s8] sm:$0x1]
        %v973 = vlaneseq
        %v974 = vshrl.u32 %v973, 7
        %v975 = vsub.s32 0, %v974
        %v976 = vrot.slane %v971, %v975
        %v994 = vunpack.c.l.b16 %v955
        %v995 = vunpack.c.l.b16 %v956
        %v996 = vunpack.c.l.b16 %v957
        %v997 = vunpack.c.l.b16 %v958
        %v998 = vunpack.c.l.b16 %v959
        %v999 = vunpack.c.l.b16 %v960
        %v1000 = vunpack.c.l.b16 %v961
        %v1001 = vunpack.c.l.b16 %v962
        %v1002 = vunpack.c.l.b16 %v963
        %v1003 = vunpack.c.l.b16 %v964
        %v1004 = vunpack.c.l.b16 %v965
        %v1005 = vunpack.c.l.b16 %v966
        %v1006 = vunpack.c.l.b16 %v967
        %v1007 = vunpack.c.l.b16 %v968
        %v1008 = vunpack.c.l.b16 %v969
        %v1009 = vunpack.c.l.b16 %v970
        %v1010 = vpack.c.b16 %v995, %v994
        %v1011 = vpack.c.b16 %v997, %v996
        %v1012 = vpack.c.b16 %v999, %v998
        %v1013 = vpack.c.b16 %v1001, %v1000
        %v1014 = vpack.c.b16 %v1003, %v1002
        %v1015 = vpack.c.b16 %v1005, %v1004
        %v1016 = vpack.c.b16 %v1007, %v1006
        %v1017 = vpack.c.b16 %v1009, %v1008
        %1026 = vmatprep.subr.bf16.mxu0 0
        %1027 = vmatpush1.bf16.msra.mxu0 %v1010
        %1028 = vmatprep.subr.bf16.mxu0 0
        %1029 = vmatpush1.bf16.msra.mxu0 %v1011
        %1030 = vmatprep.subr.bf16.mxu0 0
        %1031 = vmatpush1.bf16.msra.mxu0 %v1012
        %1032 = vmatprep.subr.bf16.mxu0 0
        %1033 = vmatpush1.bf16.msra.mxu0 %v1013
        %1034 = vmatprep.subr.bf16.mxu0 0
        %1035 = vmatpush1.bf16.msra.mxu0 %v1014
        %1036 = vmatprep.subr.bf16.mxu0 0
        %1037 = vmatpush1.bf16.msra.mxu0 %v1015
        %1038 = vmatprep.subr.bf16.mxu0 0
        %1039 = vmatpush1.bf16.msra.mxu0 %v1016
        %1040 = vmatprep.subr.bf16.mxu0 0
        %1041 = vmatpush1.bf16.msra.mxu0 %v1017
        %1042 = vmatprep.subr.bf16.mxu0 0
        %1043 = vmatpush1.bf16.msra.mxu0 0
        %1044 = vmatprep.subr.bf16.mxu0 0
        %1045 = vmatpush1.bf16.msra.mxu0 0
        %1046 = vmatprep.subr.bf16.mxu0 0
        %1047 = vmatpush1.bf16.msra.mxu0 0
        %1048 = vmatprep.subr.bf16.mxu0 0
        %1049 = vmatpush1.bf16.msra.mxu0 0
        %1050 = vmatprep.subr.bf16.mxu0 0
        %1051 = vmatpush1.bf16.msra.mxu0 0
        %1052 = vmatprep.subr.bf16.mxu0 0
        %1053 = vmatpush1.bf16.msra.mxu0 0
        %1054 = vmatprep.subr.bf16.mxu0 0
        %1055 = vmatpush1.bf16.msra.mxu0 0
        %1056 = vmatprep.subr.bf16.mxu0 0
        %1057 = vmatpush1.bf16.msra.mxu0 0
        %1058 = vmatprep.mubr.bf16.mxu0 0
        %1059 = vmatmul.mubr.bf16.gmra.mrb[0].mxu0 %v954
        %v1060 = vpop.f32.mrb[0].mxu0
        %v1061 = vadd.f32 %v976, %v1060
        %v1062 = vpop.f32.mrb[0].mxu0
        %v1063 = vpop.f32.mrb[0].mxu0
        %v1064 = vpop.f32.mrb[0].mxu0
        %1065 = vdwg.mxu0
        %1066 = vmax.xlane.f32.xlu0 %v1061
        %v1067 = vpop.xlane.xlu0 %1066
        %v1068 = vsub.f32 %v1061, %v1067
        %v1069 = vmul.f32 %v1068, 1.442695
        %v1070 = vpow.pop %v1069
        %1071 = vadd.xlane.f32.xlu0 %v1070
        %v1072 = vpop.xlane.xlu0 %1071
        %v1073 = vlog2.pop %v1072
        %v1074 = vmul.f32 %v1073, 0.6931472
        %v1075 = vadd.f32 %v1067, %v1074
        %v1076 = vsub.f32 %v1061, %v1075
        %v1077 = vld [vmem:[%s463] sm:$0xff]
        %v1078 = vlaneseq
        %v1079 = vand.u32 %v1078, 127
        %1080 = vset.pattern.permute.xlu0 0
        %1081 = vperm.xlu0 %1080, %v1077
        %v1082 = vpop.permute.xlu0 %1081
        %vm1083 = vcmp.eq.s32.totalorder %v1079, %v1082
        %v1084 = vsel %vm1083, 1, 0
        %v1085 = vcvt.s32.f32 %v1084
        %v1086 = vmul.f32 %v1076, %v1085
        %1087 = vmatprep.subr.mxu0 0.0
        %v1088 = vand.u32 %v1086, 4294901760
        %1089 = vmatpush1.xpose.msra.mxu0 %v1088
        %1090 = vmatprep.subr.mxu0 0.0
        %1091 = vmatpush1.xpose.msra.mxu0 0.0
        %1092 = vmatprep.subr.mxu0 0.0
        %1093 = vmatpush1.xpose.msra.mxu0 0.0
        %1094 = vmatprep.subr.mxu0 0.0
        %1095 = vmatpush1.xpose.msra.mxu0 0.0
        %1096 = vmatprep.subr.mxu0 0.0
        %1097 = vmatpush1.xpose.msra.mxu0 0.0
        %1098 = vmatprep.subr.mxu0 0.0
        %1099 = vmatpush1.xpose.msra.mxu0 0.0
        %1100 = vmatprep.subr.mxu0 0.0
        %1101 = vmatpush1.xpose.msra.mxu0 0.0
        %1102 = vmatprep.subr.mxu0 0.0
        %1103 = vmatpush1.xpose.msra.mxu0 0.0
        %1104 = vmatprep.subr.mxu0 0.0
        %1105 = vmatpush1.xpose.msra.mxu0 0.0
        %1106 = vmatprep.subr.mxu0 0.0
        %1107 = vmatpush1.xpose.msra.mxu0 0.0
        %1108 = vmatprep.subr.mxu0 0.0
        %1109 = vmatpush1.xpose.msra.mxu0 0.0
        %1110 = vmatprep.subr.mxu0 0.0
        %1111 = vmatpush1.xpose.msra.mxu0 0.0
        %1112 = vmatprep.subr.mxu0 0.0
        %1113 = vmatpush1.xpose.msra.mxu0 0.0
        %1114 = vmatprep.subr.mxu0 0.0
        %1115 = vmatpush1.xpose.msra.mxu0 0.0
        %1116 = vmatprep.subr.mxu0 0.0
        %1117 = vmatpush1.xpose.msra.mxu0 0.0
        %1118 = vmatprep.subr.mxu0 0.0
        %1119 = vmatpush1.xpose.msra.mxu0 0.0
        %1120 = vmatprep.subr.mxu0 0.0
        %1121 = vmatpush1.xpose.msra.mxu0 0.0
        %1122 = vmatprep.subr.mxu0 0.0
        %1123 = vmatpush1.xpose.msra.mxu0 0.0
        %1124 = vmatprep.subr.mxu0 0.0
        %1125 = vmatpush1.xpose.msra.mxu0 0.0
        %1126 = vmatprep.subr.mxu0 0.0
        %1127 = vmatpush1.xpose.msra.mxu0 0.0
        %1128 = vmatprep.subr.mxu0 0.0
        %1129 = vmatpush1.xpose.msra.mxu0 0.0
        %1130 = vmatprep.subr.mxu0 0.0
        %1131 = vmatpush1.xpose.msra.mxu0 0.0
        %1132 = vmatprep.subr.mxu0 0.0
        %1133 = vmatpush1.xpose.msra.mxu0 0.0
        %1134 = vmatprep.subr.mxu0 0.0
        %1135 = vmatpush1.xpose.msra.mxu0 0.0
        %1136 = vmatprep.subr.mxu0 0.0
        %1137 = vmatpush1.xpose.msra.mxu0 0.0
        %1138 = vmatprep.subr.mxu0 0.0
        %1139 = vmatpush1.xpose.msra.mxu0 0.0
        %1140 = vmatprep.subr.mxu0 0.0
        %1141 = vmatpush1.xpose.msra.mxu0 0.0
        %1142 = vmatprep.subr.mxu0 0.0
        %1143 = vmatpush1.xpose.msra.mxu0 0.0
        %1144 = vmatprep.subr.mxu0 0.0
        %1145 = vmatpush1.xpose.msra.mxu0 0.0
        %1146 = vmatprep.subr.mxu0 0.0
        %1147 = vmatpush1.xpose.msra.mxu0 0.0
        %1148 = vmatprep.subr.mxu0 0.0
        %1149 = vmatpush1.xpose.msra.mxu0 0.0
        %1150 = vmatprep.subr.mxu0 0.0
        %1151 = vmatpush1.xpose.msra.mxu0 0.0
        %1152 = vmatprep.mubr.f32.mxu0 0.0
        %1153 = vmatmul.mubr.f32.gmra.mrb[0].mxu0 0.0
        %v1154 = vpop.f32.mrb[0].mxu0
        %v1155 = vadd.f32 0.0, %v1154
        %v1156 = vpop.f32.mrb[0].mxu0
        %1157 = vdwg.mxu0
        %1158 = vmatprep.subr.mxu0 0.0
        %v1159 = vand.u32 %v1086, 4294901760
        %v1160 = vsub.f32 %v1086, %v1159
        %v1161 = vand.u32 %v1160, 4294901760
        %v1162 = vsub.f32 %v1160, %v1161
        %v1163 = vand.u32 %v1162, 4294901760
        %1164 = vmatpush1.xpose.msra.mxu0 %v1163
        %1165 = vmatprep.subr.mxu0 0.0
        %1166 = vmatpush1.xpose.msra.mxu0 0.0
        %1167 = vmatprep.subr.mxu0 0.0
        %1168 = vmatpush1.xpose.msra.mxu0 0.0
        %1169 = vmatprep.subr.mxu0 0.0
        %1170 = vmatpush1.xpose.msra.mxu0 0.0
        %1171 = vmatprep.subr.mxu0 0.0
        %1172 = vmatpush1.xpose.msra.mxu0 0.0
        %1173 = vmatprep.subr.mxu0 0.0
        %1174 = vmatpush1.xpose.msra.mxu0 0.0
        %1175 = vmatprep.subr.mxu0 0.0
        %1176 = vmatpush1.xpose.msra.mxu0 0.0
        %1177 = vmatprep.subr.mxu0 0.0
        %1178 = vmatpush1.xpose.msra.mxu0 0.0
        %1179 = vmatprep.subr.mxu0 0.0
        %1180 = vmatpush1.xpose.msra.mxu0 0.0
        %1181 = vmatprep.subr.mxu0 0.0
        %1182 = vmatpush1.xpose.msra.mxu0 0.0
        %1183 = vmatprep.subr.mxu0 0.0
        %1184 = vmatpush1.xpose.msra.mxu0 0.0
        %1185 = vmatprep.subr.mxu0 0.0
        %1186 = vmatpush1.xpose.msra.mxu0 0.0
        %1187 = vmatprep.subr.mxu0 0.0
        %1188 = vmatpush1.xpose.msra.mxu0 0.0
        %1189 = vmatprep.subr.mxu0 0.0
        %1190 = vmatpush1.xpose.msra.mxu0 0.0
        %1191 = vmatprep.subr.mxu0 0.0
        %1192 = vmatpush1.xpose.msra.mxu0 0.0
        %1193 = vmatprep.subr.mxu0 0.0
        %1194 = vmatpush1.xpose.msra.mxu0 0.0
        %1195 = vmatprep.subr.mxu0 0.0
        %1196 = vmatpush1.xpose.msra.mxu0 0.0
        %1197 = vmatprep.subr.mxu0 0.0
        %1198 = vmatpush1.xpose.msra.mxu0 0.0
        %1199 = vmatprep.subr.mxu0 0.0
        %1200 = vmatpush1.xpose.msra.mxu0 0.0
        %1201 = vmatprep.subr.mxu0 0.0
        %1202 = vmatpush1.xpose.msra.mxu0 0.0
        %1203 = vmatprep.subr.mxu0 0.0
        %1204 = vmatpush1.xpose.msra.mxu0 0.0
        %1205 = vmatprep.subr.mxu0 0.0
        %1206 = vmatpush1.xpose.msra.mxu0 0.0
        %1207 = vmatprep.subr.mxu0 0.0
        %1208 = vmatpush1.xpose.msra.mxu0 0.0
        %1209 = vmatprep.subr.mxu0 0.0
        %1210 = vmatpush1.xpose.msra.mxu0 0.0
        %1211 = vmatprep.subr.mxu0 0.0
        %1212 = vmatpush1.xpose.msra.mxu0 0.0
        %1213 = vmatprep.subr.mxu0 0.0
        %1214 = vmatpush1.xpose.msra.mxu0 0.0
        %1215 = vmatprep.subr.mxu0 0.0
        %1216 = vmatpush1.xpose.msra.mxu0 0.0
        %1217 = vmatprep.subr.mxu0 0.0
        %1218 = vmatpush1.xpose.msra.mxu0 0.0
        %1219 = vmatprep.subr.mxu0 0.0
        %1220 = vmatpush1.xpose.msra.mxu0 0.0
        %1221 = vmatprep.subr.mxu0 0.0
        %1222 = vmatpush1.xpose.msra.mxu0 0.0
        %1223 = vmatprep.subr.mxu0 0.0
        %1224 = vmatpush1.xpose.msra.mxu0 0.0
        %1225 = vmatprep.subr.mxu0 0.0
        %1226 = vmatpush1.xpose.msra.mxu0 0.0
        %1227 = vmatprep.mubr.f32.mxu0 0.0
        %1228 = vmatmul.mubr.f32.gmra.mrb[0].mxu0 1.0
        %v1229 = vpop.f32.mrb[0].mxu0
        %v1230 = vadd.f32 %v1155, %v1229
        %v1231 = vpop.f32.mrb[0].mxu0
        %1232 = vdwg.mxu0
        %1233 = vmatprep.subr.mxu0 0.0
        %v1234 = vand.u32 %v1086, 4294901760
        %v1235 = vsub.f32 %v1086, %v1234
        %1236 = vmatpush1.xpose.msra.mxu0 %v1235
        %1237 = vmatprep.subr.mxu0 0.0
        %1238 = vmatpush1.xpose.msra.mxu0 0.0
        %1239 = vmatprep.subr.mxu0 0.0
        %1240 = vmatpush1.xpose.msra.mxu0 0.0
        %1241 = vmatprep.subr.mxu0 0.0
        %1242 = vmatpush1.xpose.msra.mxu0 0.0
        %1243 = vmatprep.subr.mxu0 0.0
        %1244 = vmatpush1.xpose.msra.mxu0 0.0
        %1245 = vmatprep.subr.mxu0 0.0
        %1246 = vmatpush1.xpose.msra.mxu0 0.0
        %1247 = vmatprep.subr.mxu0 0.0
        %1248 = vmatpush1.xpose.msra.mxu0 0.0
        %1249 = vmatprep.subr.mxu0 0.0
        %1250 = vmatpush1.xpose.msra.mxu0 0.0
        %1251 = vmatprep.subr.mxu0 0.0
        %1252 = vmatpush1.xpose.msra.mxu0 0.0
        %1253 = vmatprep.subr.mxu0 0.0
        %1254 = vmatpush1.xpose.msra.mxu0 0.0
        %1255 = vmatprep.subr.mxu0 0.0
        %1256 = vmatpush1.xpose.msra.mxu0 0.0
        %1257 = vmatprep.subr.mxu0 0.0
        %1258 = vmatpush1.xpose.msra.mxu0 0.0
        %1259 = vmatprep.subr.mxu0 0.0
        %1260 = vmatpush1.xpose.msra.mxu0 0.0
        %1261 = vmatprep.subr.mxu0 0.0
        %1262 = vmatpush1.xpose.msra.mxu0 0.0
        %1263 = vmatprep.subr.mxu0 0.0
        %1264 = vmatpush1.xpose.msra.mxu0 0.0
        %1265 = vmatprep.subr.mxu0 0.0
        %1266 = vmatpush1.xpose.msra.mxu0 0.0
        %1267 = vmatprep.subr.mxu0 0.0
        %1268 = vmatpush1.xpose.msra.mxu0 0.0
        %1269 = vmatprep.subr.mxu0 0.0
        %1270 = vmatpush1.xpose.msra.mxu0 0.0
        %1271 = vmatprep.subr.mxu0 0.0
        %1272 = vmatpush1.xpose.msra.mxu0 0.0
        %1273 = vmatprep.subr.mxu0 0.0
        %1274 = vmatpush1.xpose.msra.mxu0 0.0
        %1275 = vmatprep.subr.mxu0 0.0
        %1276 = vmatpush1.xpose.msra.mxu0 0.0
        %1277 = vmatprep.subr.mxu0 0.0
        %1278 = vmatpush1.xpose.msra.mxu0 0.0
        %1279 = vmatprep.subr.mxu0 0.0
        %1280 = vmatpush1.xpose.msra.mxu0 0.0
        %1281 = vmatprep.subr.mxu0 0.0
        %1282 = vmatpush1.xpose.msra.mxu0 0.0
        %1283 = vmatprep.subr.mxu0 0.0
        %1284 = vmatpush1.xpose.msra.mxu0 0.0
        %1285 = vmatprep.subr.mxu0 0.0
        %1286 = vmatpush1.xpose.msra.mxu0 0.0
        %1287 = vmatprep.subr.mxu0 0.0
        %1288 = vmatpush1.xpose.msra.mxu0 0.0
        %1289 = vmatprep.subr.mxu0 0.0
        %1290 = vmatpush1.xpose.msra.mxu0 0.0
        %1291 = vmatprep.subr.mxu0 0.0
        %1292 = vmatpush1.xpose.msra.mxu0 0.0
        %1293 = vmatprep.subr.mxu0 0.0
        %1294 = vmatpush1.xpose.msra.mxu0 0.0
        %1295 = vmatprep.subr.mxu0 0.0
        %1296 = vmatpush1.xpose.msra.mxu0 0.0
        %1297 = vmatprep.subr.mxu0 0.0
        %1298 = vmatpush1.xpose.msra.mxu0 0.0
        %1299 = vmatprep.mubr.f32.mxu0 0.0
        %1300 = vmatmul.mubr.f32.gmra.mrb[0].mxu0 0.0
        %v1301 = vpop.f32.mrb[0].mxu0
        %v1302 = vadd.f32 %v1230, %v1301
        %v1303 = vpop.f32.mrb[0].mxu0
        %1304 = vdwg.mxu0
        %1305 = vmatprep.subr.mxu0 0.0
        %v1306 = vand.u32 %v1086, 4294901760
        %1307 = vmatpush1.xpose.msra.mxu0 %v1306
        %1308 = vmatprep.subr.mxu0 0.0
        %1309 = vmatpush1.xpose.msra.mxu0 0.0
        %1310 = vmatprep.subr.mxu0 0.0
        %1311 = vmatpush1.xpose.msra.mxu0 0.0
        %1312 = vmatprep.subr.mxu0 0.0
        %1313 = vmatpush1.xpose.msra.mxu0 0.0
        %1314 = vmatprep.subr.mxu0 0.0
        %1315 = vmatpush1.xpose.msra.mxu0 0.0
        %1316 = vmatprep.subr.mxu0 0.0
        %1317 = vmatpush1.xpose.msra.mxu0 0.0
        %1318 = vmatprep.subr.mxu0 0.0
        %1319 = vmatpush1.xpose.msra.mxu0 0.0
        %1320 = vmatprep.subr.mxu0 0.0
        %1321 = vmatpush1.xpose.msra.mxu0 0.0
        %1322 = vmatprep.subr.mxu0 0.0
        %1323 = vmatpush1.xpose.msra.mxu0 0.0
        %1324 = vmatprep.subr.mxu0 0.0
        %1325 = vmatpush1.xpose.msra.mxu0 0.0
        %1326 = vmatprep.subr.mxu0 0.0
        %1327 = vmatpush1.xpose.msra.mxu0 0.0
        %1328 = vmatprep.subr.mxu0 0.0
        %1329 = vmatpush1.xpose.msra.mxu0 0.0
        %1330 = vmatprep.subr.mxu0 0.0
        %1331 = vmatpush1.xpose.msra.mxu0 0.0
        %1332 = vmatprep.subr.mxu0 0.0
        %1333 = vmatpush1.xpose.msra.mxu0 0.0
        %1334 = vmatprep.subr.mxu0 0.0
        %1335 = vmatpush1.xpose.msra.mxu0 0.0
        %1336 = vmatprep.subr.mxu0 0.0
        %1337 = vmatpush1.xpose.msra.mxu0 0.0
        %1338 = vmatprep.subr.mxu0 0.0
        %1339 = vmatpush1.xpose.msra.mxu0 0.0
        %1340 = vmatprep.subr.mxu0 0.0
        %1341 = vmatpush1.xpose.msra.mxu0 0.0
        %1342 = vmatprep.subr.mxu0 0.0
        %1343 = vmatpush1.xpose.msra.mxu0 0.0
        %1344 = vmatprep.subr.mxu0 0.0
        %1345 = vmatpush1.xpose.msra.mxu0 0.0
        %1346 = vmatprep.subr.mxu0 0.0
        %1347 = vmatpush1.xpose.msra.mxu0 0.0
        %1348 = vmatprep.subr.mxu0 0.0
        %1349 = vmatpush1.xpose.msra.mxu0 0.0
        %1350 = vmatprep.subr.mxu0 0.0
        %1351 = vmatpush1.xpose.msra.mxu0 0.0
        %1352 = vmatprep.subr.mxu0 0.0
        %1353 = vmatpush1.xpose.msra.mxu0 0.0
        %1354 = vmatprep.subr.mxu0 0.0
        %1355 = vmatpush1.xpose.msra.mxu0 0.0
        %1356 = vmatprep.subr.mxu0 0.0
        %1357 = vmatpush1.xpose.msra.mxu0 0.0
        %1358 = vmatprep.subr.mxu0 0.0
        %1359 = vmatpush1.xpose.msra.mxu0 0.0
        %1360 = vmatprep.subr.mxu0 0.0
        %1361 = vmatpush1.xpose.msra.mxu0 0.0
        %1362 = vmatprep.subr.mxu0 0.0
        %1363 = vmatpush1.xpose.msra.mxu0 0.0
        %1364 = vmatprep.subr.mxu0 0.0
        %1365 = vmatpush1.xpose.msra.mxu0 0.0
        %1366 = vmatprep.subr.mxu0 0.0
        %1367 = vmatpush1.xpose.msra.mxu0 0.0
        %1368 = vmatprep.subr.mxu0 0.0
        %1369 = vmatpush1.xpose.msra.mxu0 0.0
        %1370 = vmatprep.mubr.f32.mxu0 0.0
        %1371 = vmatmul.mubr.f32.gmra.mrb[0].mxu0 0.0
        %v1372 = vpop.f32.mrb[0].mxu0
        %v1373 = vadd.f32 %v1302, %v1372
        %v1374 = vpop.f32.mrb[0].mxu0
        %1375 = vdwg.mxu0
        %1376 = vmatprep.subr.mxu0 0.0
        %v1377 = vand.u32 %v1086, 4294901760
        %v1378 = vsub.f32 %v1086, %v1377
        %v1379 = vand.u32 %v1378, 4294901760
        %1380 = vmatpush1.xpose.msra.mxu0 %v1379
        %1381 = vmatprep.subr.mxu0 0.0
        %1382 = vmatpush1.xpose.msra.mxu0 0.0
        %1383 = vmatprep.subr.mxu0 0.0
        %1384 = vmatpush1.xpose.msra.mxu0 0.0
        %1385 = vmatprep.subr.mxu0 0.0
        %1386 = vmatpush1.xpose.msra.mxu0 0.0
        %1387 = vmatprep.subr.mxu0 0.0
        %1388 = vmatpush1.xpose.msra.mxu0 0.0
        %1389 = vmatprep.subr.mxu0 0.0
        %1390 = vmatpush1.xpose.msra.mxu0 0.0
        %1391 = vmatprep.subr.mxu0 0.0
        %1392 = vmatpush1.xpose.msra.mxu0 0.0
        %1393 = vmatprep.subr.mxu0 0.0
        %1394 = vmatpush1.xpose.msra.mxu0 0.0
        %1395 = vmatprep.subr.mxu0 0.0
        %1396 = vmatpush1.xpose.msra.mxu0 0.0
        %1397 = vmatprep.subr.mxu0 0.0
        %1398 = vmatpush1.xpose.msra.mxu0 0.0
        %1399 = vmatprep.subr.mxu0 0.0
        %1400 = vmatpush1.xpose.msra.mxu0 0.0
        %1401 = vmatprep.subr.mxu0 0.0
        %1402 = vmatpush1.xpose.msra.mxu0 0.0
        %1403 = vmatprep.subr.mxu0 0.0
        %1404 = vmatpush1.xpose.msra.mxu0 0.0
        %1405 = vmatprep.subr.mxu0 0.0
        %1406 = vmatpush1.xpose.msra.mxu0 0.0
        %1407 = vmatprep.subr.mxu0 0.0
        %1408 = vmatpush1.xpose.msra.mxu0 0.0
        %1409 = vmatprep.subr.mxu0 0.0
        %1410 = vmatpush1.xpose.msra.mxu0 0.0
        %1411 = vmatprep.subr.mxu0 0.0
        %1412 = vmatpush1.xpose.msra.mxu0 0.0
        %1413 = vmatprep.subr.mxu0 0.0
        %1414 = vmatpush1.xpose.msra.mxu0 0.0
        %1415 = vmatprep.subr.mxu0 0.0
        %1416 = vmatpush1.xpose.msra.mxu0 0.0
        %1417 = vmatprep.subr.mxu0 0.0
        %1418 = vmatpush1.xpose.msra.mxu0 0.0
        %1419 = vmatprep.subr.mxu0 0.0
        %1420 = vmatpush1.xpose.msra.mxu0 0.0
        %1421 = vmatprep.subr.mxu0 0.0
        %1422 = vmatpush1.xpose.msra.mxu0 0.0
        %1423 = vmatprep.subr.mxu0 0.0
        %1424 = vmatpush1.xpose.msra.mxu0 0.0
        %1425 = vmatprep.subr.mxu0 0.0
        %1426 = vmatpush1.xpose.msra.mxu0 0.0
        %1427 = vmatprep.subr.mxu0 0.0
        %1428 = vmatpush1.xpose.msra.mxu0 0.0
        %1429 = vmatprep.subr.mxu0 0.0
        %1430 = vmatpush1.xpose.msra.mxu0 0.0
        %1431 = vmatprep.subr.mxu0 0.0
        %1432 = vmatpush1.xpose.msra.mxu0 0.0
        %1433 = vmatprep.subr.mxu0 0.0
        %1434 = vmatpush1.xpose.msra.mxu0 0.0
        %1435 = vmatprep.subr.mxu0 0.0
        %1436 = vmatpush1.xpose.msra.mxu0 0.0
        %1437 = vmatprep.subr.mxu0 0.0
        %1438 = vmatpush1.xpose.msra.mxu0 0.0
        %1439 = vmatprep.subr.mxu0 0.0
        %1440 = vmatpush1.xpose.msra.mxu0 0.0
        %1441 = vmatprep.subr.mxu0 0.0
        %1442 = vmatpush1.xpose.msra.mxu0 0.0
        %1443 = vmatprep.mubr.f32.mxu0 0.0
        %1444 = vmatmul.mubr.f32.gmra.mrb[0].mxu0 1.0
        %v1445 = vpop.f32.mrb[0].mxu0
        %v1446 = vadd.f32 %v1373, %v1445
        %v1447 = vpop.f32.mrb[0].mxu0
        %1448 = vdwg.mxu0
        %1449 = vmatprep.subr.mxu0 0.0
        %v1450 = vand.u32 %v1086, 4294901760
        %1451 = vmatpush1.xpose.msra.mxu0 %v1450
        %1452 = vmatprep.subr.mxu0 0.0
        %1453 = vmatpush1.xpose.msra.mxu0 0.0
        %1454 = vmatprep.subr.mxu0 0.0
        %1455 = vmatpush1.xpose.msra.mxu0 0.0
        %1456 = vmatprep.subr.mxu0 0.0
        %1457 = vmatpush1.xpose.msra.mxu0 0.0
        %1458 = vmatprep.subr.mxu0 0.0
        %1459 = vmatpush1.xpose.msra.mxu0 0.0
        %1460 = vmatprep.subr.mxu0 0.0
        %1461 = vmatpush1.xpose.msra.mxu0 0.0
        %1462 = vmatprep.subr.mxu0 0.0
        %1463 = vmatpush1.xpose.msra.mxu0 0.0
        %1464 = vmatprep.subr.mxu0 0.0
        %1465 = vmatpush1.xpose.msra.mxu0 0.0
        %1466 = vmatprep.subr.mxu0 0.0
        %1467 = vmatpush1.xpose.msra.mxu0 0.0
        %1468 = vmatprep.subr.mxu0 0.0
        %1469 = vmatpush1.xpose.msra.mxu0 0.0
        %1470 = vmatprep.subr.mxu0 0.0
        %1471 = vmatpush1.xpose.msra.mxu0 0.0
        %1472 = vmatprep.subr.mxu0 0.0
        %1473 = vmatpush1.xpose.msra.mxu0 0.0
        %1474 = vmatprep.subr.mxu0 0.0
        %1475 = vmatpush1.xpose.msra.mxu0 0.0
        %1476 = vmatprep.subr.mxu0 0.0
        %1477 = vmatpush1.xpose.msra.mxu0 0.0
        %1478 = vmatprep.subr.mxu0 0.0
        %1479 = vmatpush1.xpose.msra.mxu0 0.0
        %1480 = vmatprep.subr.mxu0 0.0
        %1481 = vmatpush1.xpose.msra.mxu0 0.0
        %1482 = vmatprep.subr.mxu0 0.0
        %1483 = vmatpush1.xpose.msra.mxu0 0.0
        %1484 = vmatprep.subr.mxu0 0.0
        %1485 = vmatpush1.xpose.msra.mxu0 0.0
        %1486 = vmatprep.subr.mxu0 0.0
        %1487 = vmatpush1.xpose.msra.mxu0 0.0
        %1488 = vmatprep.subr.mxu0 0.0
        %1489 = vmatpush1.xpose.msra.mxu0 0.0
        %1490 = vmatprep.subr.mxu0 0.0
        %1491 = vmatpush1.xpose.msra.mxu0 0.0
        %1492 = vmatprep.subr.mxu0 0.0
        %1493 = vmatpush1.xpose.msra.mxu0 0.0
        %1494 = vmatprep.subr.mxu0 0.0
        %1495 = vmatpush1.xpose.msra.mxu0 0.0
        %1496 = vmatprep.subr.mxu0 0.0
        %1497 = vmatpush1.xpose.msra.mxu0 0.0
        %1498 = vmatprep.subr.mxu0 0.0
        %1499 = vmatpush1.xpose.msra.mxu0 0.0
        %1500 = vmatprep.subr.mxu0 0.0
        %1501 = vmatpush1.xpose.msra.mxu0 0.0
        %1502 = vmatprep.subr.mxu0 0.0
        %1503 = vmatpush1.xpose.msra.mxu0 0.0
        %1504 = vmatprep.subr.mxu0 0.0
        %1505 = vmatpush1.xpose.msra.mxu0 0.0
        %1506 = vmatprep.subr.mxu0 0.0
        %1507 = vmatpush1.xpose.msra.mxu0 0.0
        %1508 = vmatprep.subr.mxu0 0.0
        %1509 = vmatpush1.xpose.msra.mxu0 0.0
        %1510 = vmatprep.subr.mxu0 0.0
        %1511 = vmatpush1.xpose.msra.mxu0 0.0
        %1512 = vmatprep.subr.mxu0 0.0
        %1513 = vmatpush1.xpose.msra.mxu0 0.0
        %1514 = vmatprep.mubr.f32.mxu0 0.0
        %1515 = vmatmul.mubr.f32.gmra.mrb[0].mxu0 1.0
        %v1516 = vpop.f32.mrb[0].mxu0
        %v1517 = vadd.f32 %v1446, %v1516
        %v1518 = vpop.f32.mrb[0].mxu0
        %1519 = vdwg.mxu0
        %v1520 = vsub.f32 0.0, %v1517
        %vm1521 = vcmask 57344
        %1522 = vst.msk [vmem:[%s448] sm:$0x1] %vm1521, %v1520
        %vm1523 = vcmp.eq.f32.partialorder %v1061, %v1067
        %v1524 = vsel %vm1523, %v1079, 128
        %v1525 = vand.u32 %v1524, 65535
        %v1526 = vshra.s32 %v1524, 16
        %v1527 = vcvt.s32.f32 %v1525
        %v1528 = vcvt.s32.f32 %v1526
        %1529 = vmin.xlane.f32.xlu0 %v1528
        %v1530 = vpop.xlane.xlu0 %1529
        %vm1531 = vcmp.eq.f32.partialorder %v1528, %v1530
        %v1532 = vsel %vm1531, %v1527, inf
        %1533 = vmin.xlane.f32.xlu0 %v1532
        %v1534 = vpop.xlane.xlu0 %1533
        %v1535 = vcvt.f32.s32 %v1534
        %v1536 = vcvt.f32.s32 %v1530
        %v1537 = vshll.u32 %v1536, 16
        %v1538 = vadd.s32 %v1537, %v1535
        %vm1539 = vcmask 7168
        %1540 = vst.msk [vmem:[%s467] sm:$0xff] %vm1539, %v1538
        %s1541 = sand.u32 %s242, 1
        %s1542 = scalar_lea.sflag [#allocation4], %s1541
        %s1543 = sand.u32 %s242, 1
        %s1544 = scalar_lea.vmem [#allocation10], %s1543
        %p1545 = scmp.lt.s32.totalorder %s30, 1
        %s1546 = scalar_select %p1545, %s30, 1
        %s1547 = smul.addr %s1546, 8
        %s1548 = scalar_lea.vmem %s10, %s1547
        // Predicated region
        $region73: #{tpu_custom_call.1} parent=55 // pred_check
          %p1549 = pneg %p252
        $region74: #{tpu_custom_call.1} parent=55 // pred_check_branch
          %1551 = sbr.rel (%p1549) target = $region76
        $region75: #{tpu_custom_call.1} parent=55 // pred_region
          %s1553 = ssub.s32 16, 16
          %1554 = vsyncadd %s1542, %s1553
          %s1555 = smul.addr %s30, 16
          %s1556 = scalar_lea.hbm %s9, %s1555
          %s1558 = sshll.u32 %s1544, 4
          %s1559 = int_to_ptr.vmem [resolvable:$true] %s1558
          %1561 = dma.vmem_to_hbm [thread:$0]  %s1559, 16, %s1556, %s1542
        $region76: #{tpu_custom_call.1} parent=55 // pred_fallthru
          _
        // Predicated region
        $region77: #{tpu_custom_call.1} parent=55 // pred_check
          %p1562 = pneg %p278
        $region78: #{tpu_custom_call.1} parent=55 // pred_check_branch
          %1564 = sbr.rel (%p1562) target = $region80
        $region79: #{tpu_custom_call.1} parent=55 // pred_region
          _
        $region80: #{tpu_custom_call.1} parent=55 // pred_fallthru
          _
      $region56: #{tpu_custom_call.1} parent=5 // pred_fallthru
        _
      %p1565 = scmp.le.s32.totalorder 2, %s25
      // Predicated region
      $region81: #{tpu_custom_call.1} parent=5 // pred_check
        %p1566 = pneg %p1565
      $region82: #{tpu_custom_call.1} parent=5 // pred_check_branch
        %1568 = sbr.rel (%p1566) target = $region84
      $region83: #{tpu_custom_call.1} parent=5 // pred_region
        %s1569 = ssub.s32 %s25, 2
        // Predicated region
        $region85: #{tpu_custom_call.1} parent=83 // pred_check
          %p1570 = pneg %p258
        $region86: #{tpu_custom_call.1} parent=83 // pred_check_branch
          %1572 = sbr.rel (%p1570) target = $region88
        $region87: #{tpu_custom_call.1} parent=83 // pred_region
          %s1573 = sand.u32 %s243, 1
          %s1574 = scalar_lea.sflag [#allocation4], %s1573
          %s1575 = sand.u32 %s243, 1
          %s1576 = scalar_lea.vmem [#allocation10], %s1575
          %1577 = dma.done %s1574, 16
        $region88: #{tpu_custom_call.1} parent=83 // pred_fallthru
          _
        // Predicated region
        $region89: #{tpu_custom_call.1} parent=83 // pred_check
          %p1578 = pneg %p284
        $region90: #{tpu_custom_call.1} parent=83 // pred_check_branch
          %1580 = sbr.rel (%p1578) target = $region92
        $region91: #{tpu_custom_call.1} parent=83 // pred_region
          %p1581 = scmp.lt.s32.totalorder %s31, 1
          %s1582 = scalar_select %p1581, %s31, 1
          %s1583 = smul.addr %s1582, 8
          %s1584 = scalar_lea.vmem %s10, %s1583
        $region92: #{tpu_custom_call.1} parent=83 // pred_fallthru
          _
      $region84: #{tpu_custom_call.1} parent=5 // pred_fallthru
        _
    $region6: #{tpu_custom_call.1} parent=1 // loop_footer
      %s29 = sadd.s32 1, %s25
    $region7: #{tpu_custom_call.1} parent=1 // loop_footer_branch
      %24 = sbr.rel target = $region3
    $region8: #{tpu_custom_call.1} parent=1 // loop_exit
      _
    %1585 = vsyncpa [#allocation3], 1
    %s1586 = scalar_lea.sflag [#allocation3], 1
    %1587 = vsyncpa %s1586, 1
    %1588 = vsyncpa [#allocation6], 1
    %1589 = vsyncpa [#allocation9], 1
    %1590 = vsyncpa [#allocation4], 1
    %s1591 = scalar_lea.sflag [#allocation4], 1
    %1592 = vsyncpa %s1591, 1

</llo_original>
